<compile_context>
chip_gen: v7x
topology: tpu7x:2x2x1
jax: 0.10.0
libtpu: 0.0.40
codegen_flags: <defaults>
</compile_context>

<pallas_src>
import math

import jax
import jax.numpy as jnp
from jax.experimental import pallas as pl
from jax.experimental.pallas import tpu as pltpu

# ---------------------------------------------------------------------------
# config (consistent with the module: d_model, d_ff, num_heads)
# ---------------------------------------------------------------------------
B = 2          # batch
L_TGT = 8      # decoder (target) sequence length
L_SRC = 8      # encoder (source) sequence length
D_MODEL = 32
NUM_HEADS = 4
D_K = D_MODEL // NUM_HEADS
D_FF = 64
EPS = 1e-6
NEG_INF = -1.0e9
_SCALE = 1.0 / math.sqrt(D_K)

N_TGT = B * L_TGT      # fused target rows (16)
N_SRC = B * L_SRC      # fused source rows (16)
D = D_MODEL

# --- weight-slab row offsets (every sub-matrix starts at lane 0; rows are x8) ---
_R_WQKV1 = 0                        # (D, 3D)  self-attn fused Wq|Wk|Wv
_R_WKV2 = _R_WQKV1 + D              # (D, 2D)  cross-attn fused Wk|Wv
_R_W1 = _R_WKV2 + D                 # (D, D_FF)
_R_W2 = _R_W1 + D                   # (D_FF, D)
_R_WQ2 = _R_W2 + D_FF               # (D, D)   cross-attn Wq
_R_WO1 = _R_WQ2 + D                 # (D, D)   self-attn Wo
_R_WO2 = _R_WO1 + D                 # (D, D)   cross-attn Wo
_W_ROWS = _R_WO2 + D
_W_LANES = 128                      # one lane tile wide

# --- bias / LN vector slab rows (32-wide vectors live in lanes 0:32) ---
(_V_LN1G, _V_LN1B, _V_LN2G, _V_LN2B, _V_LN3G, _V_LN3B,
 _V_BQ1, _V_BK1, _V_BV1, _V_BO1,
 _V_BQ2, _V_BK2, _V_BV2, _V_BO2, _V_B1, _V_B2) = range(16)
_V_ROWS = 16
_V_LANES = D_FF                     # 64 (b1 occupies a full row)


# ---------------------------------------------------------------------------
# Pallas kernel: entire decoder layer, all batches fused into rows, one call
# ---------------------------------------------------------------------------
def decoder_layer_kernel(acts_ref, mbias_ref, w_ref, vec_ref, out_ref):
    # acts_ref : (N_TGT + N_SRC, D)   rows 0:N_TGT = x, rows N_TGT: = e_output
    # mbias_ref: (2*N_TGT, N)         rows 0:N_TGT = self-attn bias, rest = cross-attn
    # w_ref    : (_W_ROWS, 128)       packed weight slab
    # vec_ref  : (_V_ROWS, D_FF)      packed biases + LN params
    x = acts_ref[0:N_TGT, :]
    eo = acts_ref[N_TGT:N_TGT + N_SRC, :]
    sbias = mbias_ref[0:N_TGT, :]                 # (N_TGT, N_TGT)
    cbias = mbias_ref[N_TGT:2 * N_TGT, :]         # (N_TGT, N_SRC)

    def vec(row, width=D):
        return vec_ref[row:row + 1, 0:width]      # (1, width)

    def layer_norm(h, g_row, b_row):
        g = vec(g_row)
        b = vec(b_row)
        mu = jnp.mean(h, axis=-1, keepdims=True)
        var = jnp.mean(h * h, axis=-1, keepdims=True) - mu * mu
        return (h - mu) * jax.lax.rsqrt(var + EPS) * g + b

    def mh_attention(q, k, v, bias):
        # q: (Nq, D), k/v: (Nk, D); heads are lane groups of D_K. bias is additive.
        outs = []
        for h in range(NUM_HEADS):
            lo, hi = h * D_K, (h + 1) * D_K
            qh, kh, vh = q[:, lo:hi], k[:, lo:hi], v[:, lo:hi]
            # scores (Nq, Nk): contract the D_K axis of both (no explicit transpose)
            s = jax.lax.dot_general(qh, kh, (((1,), (1,)), ((), ())),
                                    preferred_element_type=jnp.float32)
            s = s * _SCALE + bias
            s = s - jnp.max(s, axis=-1, keepdims=True)
            p = jnp.exp(s)
            p = p * pl.reciprocal(jnp.sum(p, axis=-1, keepdims=True), approx=True)
            outs.append(jnp.dot(p, vh, preferred_element_type=jnp.float32))
        # head-major lane concat -> (Nq, D), matches torch .transpose(1,2).view(...)
        return jnp.concatenate(outs, axis=-1)

    # ---- masked self-attention sublayer ----
    x1 = layer_norm(x, _V_LN1G, _V_LN1B)
    qkv = jnp.dot(x1, w_ref[_R_WQKV1:_R_WQKV1 + D, 0:3 * D],
                  preferred_element_type=jnp.float32)                  # (N, 3D)
    q1 = qkv[:, 0:D] + vec(_V_BQ1)
    k1 = qkv[:, D:2 * D] + vec(_V_BK1)
    v1 = qkv[:, 2 * D:3 * D] + vec(_V_BV1)
    a1 = mh_attention(q1, k1, v1, sbias)
    x = x + jnp.dot(a1, w_ref[_R_WO1:_R_WO1 + D, 0:D],
                    preferred_element_type=jnp.float32) + vec(_V_BO1)

    # ---- cross-attention sublayer ----
    x2 = layer_norm(x, _V_LN2G, _V_LN2B)
    q2 = jnp.dot(x2, w_ref[_R_WQ2:_R_WQ2 + D, 0:D],
                 preferred_element_type=jnp.float32) + vec(_V_BQ2)
    kv = jnp.dot(eo, w_ref[_R_WKV2:_R_WKV2 + D, 0:2 * D],
                 preferred_element_type=jnp.float32)                   # (M, 2D)
    k2 = kv[:, 0:D] + vec(_V_BK2)
    v2 = kv[:, D:2 * D] + vec(_V_BV2)
    a2 = mh_attention(q2, k2, v2, cbias)
    x = x + jnp.dot(a2, w_ref[_R_WO2:_R_WO2 + D, 0:D],
                    preferred_element_type=jnp.float32) + vec(_V_BO2)

    # ---- feed-forward sublayer ----
    x3 = layer_norm(x, _V_LN3G, _V_LN3B)
    h = jnp.dot(x3, w_ref[_R_W1:_R_W1 + D, 0:D_FF],
                preferred_element_type=jnp.float32) + vec(_V_B1, D_FF)
    h = jnp.maximum(h, 0.0)
    x = x + jnp.dot(h, w_ref[_R_W2:_R_W2 + D_FF, 0:D],
                    preferred_element_type=jnp.float32) + vec(_V_B2)

    out_ref[...] = x


# ---------------------------------------------------------------------------
# wrapper: pack operands into 4 slabs, fold batch into rows, build mask bias
# ---------------------------------------------------------------------------
def _block_diag_bias(mask):
    # mask (B, Lq, Lk) int (1 = keep) -> (B*Lq, B*Lk) additive f32 bias, block-diagonal
    # across batches (cross-batch attention forbidden).
    # NOTE(scaling): (B*L)^2 bias is fine at B=2/L=8; switch to a batch grid axis
    # before scaling B or L up.
    Bn, Lq, Lk = mask.shape
    within = jnp.where(mask == 0, NEG_INF, 0.0).astype(jnp.float32)
    bias = jnp.full((Bn * Lq, Bn * Lk), NEG_INF, jnp.float32)
    for b in range(Bn):
        bias = bias.at[b * Lq:(b + 1) * Lq, b * Lk:(b + 1) * Lk].set(within[b])
    return bias


def _pack_weight_slab(p):
    W = jnp.zeros((_W_ROWS, _W_LANES), jnp.float32)
    W = W.at[_R_WQKV1:_R_WQKV1 + D, 0:3 * D].set(
        jnp.concatenate([p["wq1"], p["wk1"], p["wv1"]], axis=1))
    W = W.at[_R_WKV2:_R_WKV2 + D, 0:2 * D].set(
        jnp.concatenate([p["wk2"], p["wv2"]], axis=1))
    W = W.at[_R_W1:_R_W1 + D, 0:D_FF].set(p["w1"])
    W = W.at[_R_W2:_R_W2 + D_FF, 0:D].set(p["w2"])
    W = W.at[_R_WQ2:_R_WQ2 + D, 0:D].set(p["wq2"])
    W = W.at[_R_WO1:_R_WO1 + D, 0:D].set(p["wo1"])
    W = W.at[_R_WO2:_R_WO2 + D, 0:D].set(p["wo2"])
    return W


def _pack_vec_slab(p):
    Vs = jnp.zeros((_V_ROWS, _V_LANES), jnp.float32)
    rows32 = jnp.concatenate(
        [p["ln1_g"], p["ln1_b"], p["ln2_g"], p["ln2_b"], p["ln3_g"], p["ln3_b"],
         p["bq1"], p["bk1"], p["bv1"], p["bo1"],
         p["bq2"], p["bk2"], p["bv2"], p["bo2"]], axis=0)               # (14, D)
    Vs = Vs.at[0:14, 0:D].set(rows32)
    Vs = Vs.at[_V_B1:_V_B1 + 1, 0:D_FF].set(p["b1"])
    Vs = Vs.at[_V_B2:_V_B2 + 1, 0:D].set(p["b2"])
    return Vs


@jax.jit
def decoder_layer(x, e_output, d_mask, e_mask, params):
    """x: (B, Lt, D), e_output: (B, Ls, D),
       d_mask: (B, Lt, Lt) int32, e_mask: (B, Lt, Ls) int32."""
    Bn, Lt, Dm = x.shape
    Ls = e_output.shape[1]

    acts = jnp.concatenate([x.reshape(Bn * Lt, Dm),
                            e_output.reshape(Bn * Ls, Dm)], axis=0)     # (32, 32)
    # self- and cross-attn additive biases stacked on rows (both are (B*Lt, 16) here)
    mbias = jnp.concatenate([_block_diag_bias(d_mask),
                             _block_diag_bias(e_mask)], axis=0)         # (32, 16)

    w_slab = _pack_weight_slab(params)                                  # (224, 128)
    vec_slab = _pack_vec_slab(params)                                   # (16, 64)

    vmem = pl.BlockSpec(memory_space=pltpu.MemorySpace.VMEM)
    out2d = pl.pallas_call(
        decoder_layer_kernel,
        out_shape=jax.ShapeDtypeStruct((Bn * Lt, Dm), jnp.float32),
        in_specs=[vmem, vmem, vmem, vmem],
        out_specs=vmem,
    )(acts, mbias, w_slab, vec_slab)
    return out2d.reshape(Bn, Lt, Dm)


# ---------------------------------------------------------------------------
# independent pure-JAX reference (mirrors the PyTorch module math directly)
# ---------------------------------------------------------------------------
def reference_decoder_layer(x, e_output, d_mask, e_mask, p):
    with jax.default_matmul_precision("float32"):
        def layer_norm(h, g, b):
            mu = jnp.mean(h, axis=-1, keepdims=True)
            var = jnp.mean((h - mu) ** 2, axis=-1, keepdims=True)
            return (h - mu) / jnp.sqrt(var + EPS) * g + b

        def mha(q_in, kv_in, mask, wq, bq, wk, bk, wv, bv, wo, bo):
            Bn, Lq, Dm = q_in.shape
            Lk = kv_in.shape[1]
            q = (q_in @ wq + bq).reshape(Bn, Lq, NUM_HEADS, D_K).transpose(0, 2, 1, 3)
            k = (kv_in @ wk + bk).reshape(Bn, Lk, NUM_HEADS, D_K).transpose(0, 2, 1, 3)
            v = (kv_in @ wv + bv).reshape(Bn, Lk, NUM_HEADS, D_K).transpose(0, 2, 1, 3)
            s = jnp.einsum('bhqd,bhkd->bhqk', q, k) / math.sqrt(D_K)
            s = jnp.where(mask[:, None, :, :] == 0, NEG_INF, s)
            a = jax.nn.softmax(s, axis=-1)
            o = jnp.einsum('bhqk,bhkd->bhqd', a, v)
            o = o.transpose(0, 2, 1, 3).reshape(Bn, Lq, Dm)
            return o @ wo + bo

        h = x
        x1 = layer_norm(h, p["ln1_g"], p["ln1_b"])
        h = h + mha(x1, x1, d_mask, p["wq1"], p["bq1"], p["wk1"], p["bk1"],
                    p["wv1"], p["bv1"], p["wo1"], p["bo1"])
        x2 = layer_norm(h, p["ln2_g"], p["ln2_b"])
        h = h + mha(x2, e_output, e_mask, p["wq2"], p["bq2"], p["wk2"], p["bk2"],
                    p["wv2"], p["bv2"], p["wo2"], p["bo2"])
        x3 = layer_norm(h, p["ln3_g"], p["ln3_b"])
        ff = jnp.maximum(x3 @ p["w1"] + p["b1"], 0.0) @ p["w2"] + p["b2"]
        return h + ff


# ---------------------------------------------------------------------------
# deterministic parameter construction (weights stored as (in, out))
# ---------------------------------------------------------------------------
def make_params(key):
    keys = jax.random.split(key, 32)
    ki = iter(keys)

    def w(shape, scale=0.05):
        return (scale * jax.random.normal(next(ki), shape)).astype(jnp.float32)

    params = {
        "ln1_g": jnp.ones((1, D_MODEL), jnp.float32),
        "ln1_b": jnp.zeros((1, D_MODEL), jnp.float32),
        "ln2_g": jnp.ones((1, D_MODEL), jnp.float32),
        "ln2_b": jnp.zeros((1, D_MODEL), jnp.float32),
        "ln3_g": jnp.ones((1, D_MODEL), jnp.float32),
        "ln3_b": jnp.zeros((1, D_MODEL), jnp.float32),
    }
    for tag in ("1", "2"):  # masked self-attn, cross-attn
        params[f"wq{tag}"] = w((D_MODEL, D_MODEL))
        params[f"bq{tag}"] = w((1, D_MODEL), 0.01)
        params[f"wk{tag}"] = w((D_MODEL, D_MODEL))
        params[f"bk{tag}"] = w((1, D_MODEL), 0.01)
        params[f"wv{tag}"] = w((D_MODEL, D_MODEL))
        params[f"bv{tag}"] = w((1, D_MODEL), 0.01)
        params[f"wo{tag}"] = w((D_MODEL, D_MODEL))
        params[f"bo{tag}"] = w((1, D_MODEL), 0.01)
    params["w1"] = w((D_MODEL, D_FF))
    params["b1"] = w((1, D_FF), 0.01)
    params["w2"] = w((D_FF, D_MODEL))
    params["b2"] = w((1, D_MODEL), 0.01)
    return params


if __name__ == "__main__":
    key = jax.random.PRNGKey(0)
    k_x, k_eo, k_p = jax.random.split(key, 3)

    x = jax.random.normal(k_x, (B, L_TGT, D_MODEL), jnp.float32)
    e_output = jax.random.normal(k_eo, (B, L_SRC, D_MODEL), jnp.float32)

    # causal decoder mask (1 = attend, 0 = masked), full encoder mask
    causal = jnp.tril(jnp.ones((L_TGT, L_TGT), jnp.int32))
    d_mask = jnp.broadcast_to(causal, (B, L_TGT, L_TGT)).astype(jnp.int32)
    e_mask = jnp.ones((B, L_TGT, L_SRC), jnp.int32)

    params = make_params(k_p)

    out = jax.block_until_ready(decoder_layer(x, e_output, d_mask, e_mask, params))
    ref = jax.block_until_ready(
        reference_decoder_layer(x, e_output, d_mask, e_mask, params))

    assert out.shape == (B, L_TGT, D_MODEL)
    err = float(jnp.max(jnp.abs(out - ref)))
    assert err < 1e-3, f"Pallas result mismatch vs reference (max abs err {err})"

    print("KERNEL_OK")
</pallas_src>

<mosaic_0001>
module attributes {stable_mosaic.version = 11 : i64} {
  func.func @decoder_layer_kernel(%arg0: memref<32x32xf32, #tpu.memory_space<vmem>>, %arg1: memref<32x16xf32, #tpu.memory_space<vmem>>, %arg2: memref<256x128xf32, #tpu.memory_space<vmem>>, %arg3: memref<16x64xf32, #tpu.memory_space<vmem>>, %arg4: memref<16x32xf32, #tpu.memory_space<vmem>>) attributes {dimension_semantics = [], scalar_prefetch = 0 : i64, scratch_operands = 0 : i64, tpu.core_type = #tpu.core_type<tc>} {
    %c0 = arith.constant 0 : index
    %c0_0 = arith.constant 0 : index
    %0 = vector.load %arg0[%c0, %c0_0] : memref<32x32xf32, #tpu.memory_space<vmem>>, vector<16x32xf32>
    %c16 = arith.constant 16 : index
    %c0_1 = arith.constant 0 : index
    %1 = vector.load %arg0[%c16, %c0_1] : memref<32x32xf32, #tpu.memory_space<vmem>>, vector<16x32xf32>
    %c0_2 = arith.constant 0 : index
    %c0_3 = arith.constant 0 : index
    %2 = vector.load %arg1[%c0_2, %c0_3] : memref<32x16xf32, #tpu.memory_space<vmem>>, vector<16x16xf32>
    %c16_4 = arith.constant 16 : index
    %c0_5 = arith.constant 0 : index
    %3 = vector.load %arg1[%c16_4, %c0_5] : memref<32x16xf32, #tpu.memory_space<vmem>>, vector<16x16xf32>
    %c0_6 = arith.constant 0 : index
    %c0_7 = arith.constant 0 : index
    %4 = vector.load %arg3[%c0_6, %c0_7] : memref<16x64xf32, #tpu.memory_space<vmem>>, vector<1x32xf32>
    %c1 = arith.constant 1 : index
    %c0_8 = arith.constant 0 : index
    %5 = vector.load %arg3[%c1, %c0_8] : memref<16x64xf32, #tpu.memory_space<vmem>>, vector<1x32xf32>
    %cst = arith.constant dense<0.000000e+00> : vector<16xf32>
    %6 = vector.multi_reduction <add>, %0, %cst [1] : vector<16x32xf32> to vector<16xf32>
    %7 = vector.shape_cast %6 : vector<16xf32> to vector<16x1xf32>
    %cst_9 = arith.constant 3.200000e+01 : f32
    %8 = vector.broadcast %cst_9 : f32 to vector<16x1xf32>
    %9 = arith.divf %7, %8 : vector<16x1xf32>
    %10 = arith.mulf %0, %0 : vector<16x32xf32>
    %cst_10 = arith.constant dense<0.000000e+00> : vector<16xf32>
    %11 = vector.multi_reduction <add>, %10, %cst_10 [1] : vector<16x32xf32> to vector<16xf32>
    %12 = vector.shape_cast %11 : vector<16xf32> to vector<16x1xf32>
    %cst_11 = arith.constant 3.200000e+01 : f32
    %13 = vector.broadcast %cst_11 : f32 to vector<16x1xf32>
    %14 = arith.divf %12, %13 : vector<16x1xf32>
    %15 = arith.mulf %9, %9 : vector<16x1xf32>
    %16 = arith.subf %14, %15 : vector<16x1xf32>
    %17 = vector.broadcast %9 : vector<16x1xf32> to vector<16x32xf32>
    %18 = arith.subf %0, %17 : vector<16x32xf32>
    %cst_12 = arith.constant 9.99999997E-7 : f32
    %19 = vector.broadcast %cst_12 : f32 to vector<16x1xf32>
    %20 = arith.addf %16, %19 : vector<16x1xf32>
    %21 = math.rsqrt %20 : vector<16x1xf32>
    %22 = vector.broadcast %21 : vector<16x1xf32> to vector<16x32xf32>
    %23 = arith.mulf %18, %22 : vector<16x32xf32>
    %24 = vector.broadcast %4 : vector<1x32xf32> to vector<16x32xf32>
    %25 = arith.mulf %23, %24 : vector<16x32xf32>
    %26 = vector.broadcast %5 : vector<1x32xf32> to vector<16x32xf32>
    %27 = arith.addf %25, %26 : vector<16x32xf32>
    %c0_13 = arith.constant 0 : index
    %c0_14 = arith.constant 0 : index
    %28 = vector.load %arg2[%c0_13, %c0_14] : memref<256x128xf32, #tpu.memory_space<vmem>>, vector<32x96xf32>
    %cst_15 = arith.constant dense<0.000000e+00> : vector<16x96xf32>
    %29 = tpu.matmul %27, %28, %cst_15 {dimension_numbers = #tpu.dot_dimension_numbers<[1], [0], [0], [1], [0, 0, 1, 1], [], []>} : vector<16x32xf32>, vector<32x96xf32>, vector<16x96xf32> -> vector<16x96xf32>
    %30 = vector.extract_strided_slice %29 {offsets = [0, 0], sizes = [16, 32], strides = [1, 1]} : vector<16x96xf32> to vector<16x32xf32>
    %c6 = arith.constant 6 : index
    %c0_16 = arith.constant 0 : index
    %31 = vector.load %arg3[%c6, %c0_16] : memref<16x64xf32, #tpu.memory_space<vmem>>, vector<1x32xf32>
    %32 = vector.broadcast %31 : vector<1x32xf32> to vector<16x32xf32>
    %33 = arith.addf %30, %32 : vector<16x32xf32>
    %34 = vector.extract_strided_slice %29 {offsets = [0, 32], sizes = [16, 32], strides = [1, 1]} : vector<16x96xf32> to vector<16x32xf32>
    %c7 = arith.constant 7 : index
    %c0_17 = arith.constant 0 : index
    %35 = vector.load %arg3[%c7, %c0_17] : memref<16x64xf32, #tpu.memory_space<vmem>>, vector<1x32xf32>
    %36 = vector.broadcast %35 : vector<1x32xf32> to vector<16x32xf32>
    %37 = arith.addf %34, %36 : vector<16x32xf32>
    %38 = vector.extract_strided_slice %29 {offsets = [0, 64], sizes = [16, 32], strides = [1, 1]} : vector<16x96xf32> to vector<16x32xf32>
    %c8 = arith.constant 8 : index
    %c0_18 = arith.constant 0 : index
    %39 = vector.load %arg3[%c8, %c0_18] : memref<16x64xf32, #tpu.memory_space<vmem>>, vector<1x32xf32>
    %40 = vector.broadcast %39 : vector<1x32xf32> to vector<16x32xf32>
    %41 = arith.addf %38, %40 : vector<16x32xf32>
    %42 = vector.extract_strided_slice %33 {offsets = [0, 0], sizes = [16, 8], strides = [1, 1]} : vector<16x32xf32> to vector<16x8xf32>
    %43 = vector.extract_strided_slice %37 {offsets = [0, 0], sizes = [16, 8], strides = [1, 1]} : vector<16x32xf32> to vector<16x8xf32>
    %44 = vector.extract_strided_slice %41 {offsets = [0, 0], sizes = [16, 8], strides = [1, 1]} : vector<16x32xf32> to vector<16x8xf32>
    %cst_19 = arith.constant dense<0.000000e+00> : vector<16x16xf32>
    %45 = tpu.matmul %42, %43, %cst_19 {dimension_numbers = #tpu.dot_dimension_numbers<[1], [1], [0], [0], [0, 0, 1, 0], [], []>} : vector<16x8xf32>, vector<16x8xf32>, vector<16x16xf32> -> vector<16x16xf32>
    %cst_20 = arith.constant 0.353553385 : f32
    %46 = vector.broadcast %cst_20 : f32 to vector<16x16xf32>
    %47 = arith.mulf %45, %46 : vector<16x16xf32>
    %48 = arith.addf %47, %2 : vector<16x16xf32>
    %cst_21 = arith.constant dense<0xFF800000> : vector<16xf32>
    %49 = vector.multi_reduction <maximumf>, %48, %cst_21 [1] : vector<16x16xf32> to vector<16xf32>
    %50 = vector.shape_cast %49 : vector<16xf32> to vector<16x1xf32>
    %51 = vector.broadcast %50 : vector<16x1xf32> to vector<16x16xf32>
    %52 = arith.subf %48, %51 : vector<16x16xf32>
    %53 = math.exp %52 : vector<16x16xf32>
    %cst_22 = arith.constant dense<0.000000e+00> : vector<16xf32>
    %54 = vector.multi_reduction <add>, %53, %cst_22 [1] : vector<16x16xf32> to vector<16xf32>
    %55 = vector.shape_cast %54 : vector<16xf32> to vector<16x1xf32>
    %56 = tpu.reciprocal %55 {approx = true} : vector<16x1xf32> -> vector<16x1xf32>
    %57 = vector.broadcast %56 : vector<16x1xf32> to vector<16x16xf32>
    %58 = arith.mulf %53, %57 : vector<16x16xf32>
    %cst_23 = arith.constant dense<0.000000e+00> : vector<16x8xf32>
    %59 = tpu.matmul %58, %44, %cst_23 {dimension_numbers = #tpu.dot_dimension_numbers<[1], [0], [0], [1], [0, 0, 1, 1], [], []>} : vector<16x16xf32>, vector<16x8xf32>, vector<16x8xf32> -> vector<16x8xf32>
    %60 = vector.extract_strided_slice %33 {offsets = [0, 8], sizes = [16, 8], strides = [1, 1]} : vector<16x32xf32> to vector<16x8xf32>
    %61 = vector.extract_strided_slice %37 {offsets = [0, 8], sizes = [16, 8], strides = [1, 1]} : vector<16x32xf32> to vector<16x8xf32>
    %62 = vector.extract_strided_slice %41 {offsets = [0, 8], sizes = [16, 8], strides = [1, 1]} : vector<16x32xf32> to vector<16x8xf32>
    %cst_24 = arith.constant dense<0.000000e+00> : vector<16x16xf32>
    %63 = tpu.matmul %60, %61, %cst_24 {dimension_numbers = #tpu.dot_dimension_numbers<[1], [1], [0], [0], [0, 0, 1, 0], [], []>} : vector<16x8xf32>, vector<16x8xf32>, vector<16x16xf32> -> vector<16x16xf32>
    %cst_25 = arith.constant 0.353553385 : f32
    %64 = vector.broadcast %cst_25 : f32 to vector<16x16xf32>
    %65 = arith.mulf %63, %64 : vector<16x16xf32>
    %66 = arith.addf %65, %2 : vector<16x16xf32>
    %cst_26 = arith.constant dense<0xFF800000> : vector<16xf32>
    %67 = vector.multi_reduction <maximumf>, %66, %cst_26 [1] : vector<16x16xf32> to vector<16xf32>
    %68 = vector.shape_cast %67 : vector<16xf32> to vector<16x1xf32>
    %69 = vector.broadcast %68 : vector<16x1xf32> to vector<16x16xf32>
    %70 = arith.subf %66, %69 : vector<16x16xf32>
    %71 = math.exp %70 : vector<16x16xf32>
    %cst_27 = arith.constant dense<0.000000e+00> : vector<16xf32>
    %72 = vector.multi_reduction <add>, %71, %cst_27 [1] : vector<16x16xf32> to vector<16xf32>
    %73 = vector.shape_cast %72 : vector<16xf32> to vector<16x1xf32>
    %74 = tpu.reciprocal %73 {approx = true} : vector<16x1xf32> -> vector<16x1xf32>
    %75 = vector.broadcast %74 : vector<16x1xf32> to vector<16x16xf32>
    %76 = arith.mulf %71, %75 : vector<16x16xf32>
    %cst_28 = arith.constant dense<0.000000e+00> : vector<16x8xf32>
    %77 = tpu.matmul %76, %62, %cst_28 {dimension_numbers = #tpu.dot_dimension_numbers<[1], [0], [0], [1], [0, 0, 1, 1], [], []>} : vector<16x16xf32>, vector<16x8xf32>, vector<16x8xf32> -> vector<16x8xf32>
    %78 = vector.extract_strided_slice %33 {offsets = [0, 16], sizes = [16, 8], strides = [1, 1]} : vector<16x32xf32> to vector<16x8xf32>
    %79 = vector.extract_strided_slice %37 {offsets = [0, 16], sizes = [16, 8], strides = [1, 1]} : vector<16x32xf32> to vector<16x8xf32>
    %80 = vector.extract_strided_slice %41 {offsets = [0, 16], sizes = [16, 8], strides = [1, 1]} : vector<16x32xf32> to vector<16x8xf32>
    %cst_29 = arith.constant dense<0.000000e+00> : vector<16x16xf32>
    %81 = tpu.matmul %78, %79, %cst_29 {dimension_numbers = #tpu.dot_dimension_numbers<[1], [1], [0], [0], [0, 0, 1, 0], [], []>} : vector<16x8xf32>, vector<16x8xf32>, vector<16x16xf32> -> vector<16x16xf32>
    %cst_30 = arith.constant 0.353553385 : f32
    %82 = vector.broadcast %cst_30 : f32 to vector<16x16xf32>
    %83 = arith.mulf %81, %82 : vector<16x16xf32>
    %84 = arith.addf %83, %2 : vector<16x16xf32>
    %cst_31 = arith.constant dense<0xFF800000> : vector<16xf32>
    %85 = vector.multi_reduction <maximumf>, %84, %cst_31 [1] : vector<16x16xf32> to vector<16xf32>
    %86 = vector.shape_cast %85 : vector<16xf32> to vector<16x1xf32>
    %87 = vector.broadcast %86 : vector<16x1xf32> to vector<16x16xf32>
    %88 = arith.subf %84, %87 : vector<16x16xf32>
    %89 = math.exp %88 : vector<16x16xf32>
    %cst_32 = arith.constant dense<0.000000e+00> : vector<16xf32>
    %90 = vector.multi_reduction <add>, %89, %cst_32 [1] : vector<16x16xf32> to vector<16xf32>
    %91 = vector.shape_cast %90 : vector<16xf32> to vector<16x1xf32>
    %92 = tpu.reciprocal %91 {approx = true} : vector<16x1xf32> -> vector<16x1xf32>
    %93 = vector.broadcast %92 : vector<16x1xf32> to vector<16x16xf32>
    %94 = arith.mulf %89, %93 : vector<16x16xf32>
    %cst_33 = arith.constant dense<0.000000e+00> : vector<16x8xf32>
    %95 = tpu.matmul %94, %80, %cst_33 {dimension_numbers = #tpu.dot_dimension_numbers<[1], [0], [0], [1], [0, 0, 1, 1], [], []>} : vector<16x16xf32>, vector<16x8xf32>, vector<16x8xf32> -> vector<16x8xf32>
    %96 = vector.extract_strided_slice %33 {offsets = [0, 24], sizes = [16, 8], strides = [1, 1]} : vector<16x32xf32> to vector<16x8xf32>
    %97 = vector.extract_strided_slice %37 {offsets = [0, 24], sizes = [16, 8], strides = [1, 1]} : vector<16x32xf32> to vector<16x8xf32>
    %98 = vector.extract_strided_slice %41 {offsets = [0, 24], sizes = [16, 8], strides = [1, 1]} : vector<16x32xf32> to vector<16x8xf32>
    %cst_34 = arith.constant dense<0.000000e+00> : vector<16x16xf32>
    %99 = tpu.matmul %96, %97, %cst_34 {dimension_numbers = #tpu.dot_dimension_numbers<[1], [1], [0], [0], [0, 0, 1, 0], [], []>} : vector<16x8xf32>, vector<16x8xf32>, vector<16x16xf32> -> vector<16x16xf32>
    %cst_35 = arith.constant 0.353553385 : f32
    %100 = vector.broadcast %cst_35 : f32 to vector<16x16xf32>
    %101 = arith.mulf %99, %100 : vector<16x16xf32>
    %102 = arith.addf %101, %2 : vector<16x16xf32>
    %cst_36 = arith.constant dense<0xFF800000> : vector<16xf32>
    %103 = vector.multi_reduction <maximumf>, %102, %cst_36 [1] : vector<16x16xf32> to vector<16xf32>
    %104 = vector.shape_cast %103 : vector<16xf32> to vector<16x1xf32>
    %105 = vector.broadcast %104 : vector<16x1xf32> to vector<16x16xf32>
    %106 = arith.subf %102, %105 : vector<16x16xf32>
    %107 = math.exp %106 : vector<16x16xf32>
    %cst_37 = arith.constant dense<0.000000e+00> : vector<16xf32>
    %108 = vector.multi_reduction <add>, %107, %cst_37 [1] : vector<16x16xf32> to vector<16xf32>
    %109 = vector.shape_cast %108 : vector<16xf32> to vector<16x1xf32>
    %110 = tpu.reciprocal %109 {approx = true} : vector<16x1xf32> -> vector<16x1xf32>
    %111 = vector.broadcast %110 : vector<16x1xf32> to vector<16x16xf32>
    %112 = arith.mulf %107, %111 : vector<16x16xf32>
    %cst_38 = arith.constant dense<0.000000e+00> : vector<16x8xf32>
    %113 = tpu.matmul %112, %98, %cst_38 {dimension_numbers = #tpu.dot_dimension_numbers<[1], [0], [0], [1], [0, 0, 1, 1], [], []>} : vector<16x16xf32>, vector<16x8xf32>, vector<16x8xf32> -> vector<16x8xf32>
    %114 = tpu.concatenate %59, %77, %95, %113 in 1 : vector<16x8xf32>, vector<16x8xf32>, vector<16x8xf32>, vector<16x8xf32> -> vector<16x32xf32>
    %c192 = arith.constant 192 : index
    %c0_39 = arith.constant 0 : index
    %115 = vector.load %arg2[%c192, %c0_39] : memref<256x128xf32, #tpu.memory_space<vmem>>, vector<32x32xf32>
    %cst_40 = arith.constant dense<0.000000e+00> : vector<16x32xf32>
    %116 = tpu.matmul %114, %115, %cst_40 {dimension_numbers = #tpu.dot_dimension_numbers<[1], [0], [0], [1], [0, 0, 1, 1], [], []>} : vector<16x32xf32>, vector<32x32xf32>, vector<16x32xf32> -> vector<16x32xf32>
    %117 = arith.addf %0, %116 : vector<16x32xf32>
    %c9 = arith.constant 9 : index
    %c0_41 = arith.constant 0 : index
    %118 = vector.load %arg3[%c9, %c0_41] : memref<16x64xf32, #tpu.memory_space<vmem>>, vector<1x32xf32>
    %119 = vector.broadcast %118 : vector<1x32xf32> to vector<16x32xf32>
    %120 = arith.addf %117, %119 : vector<16x32xf32>
    %c2 = arith.constant 2 : index
    %c0_42 = arith.constant 0 : index
    %121 = vector.load %arg3[%c2, %c0_42] : memref<16x64xf32, #tpu.memory_space<vmem>>, vector<1x32xf32>
    %c3 = arith.constant 3 : index
    %c0_43 = arith.constant 0 : index
    %122 = vector.load %arg3[%c3, %c0_43] : memref<16x64xf32, #tpu.memory_space<vmem>>, vector<1x32xf32>
    %cst_44 = arith.constant dense<0.000000e+00> : vector<16xf32>
    %123 = vector.multi_reduction <add>, %120, %cst_44 [1] : vector<16x32xf32> to vector<16xf32>
    %124 = vector.shape_cast %123 : vector<16xf32> to vector<16x1xf32>
    %cst_45 = arith.constant 3.200000e+01 : f32
    %125 = vector.broadcast %cst_45 : f32 to vector<16x1xf32>
    %126 = arith.divf %124, %125 : vector<16x1xf32>
    %127 = arith.mulf %120, %120 : vector<16x32xf32>
    %cst_46 = arith.constant dense<0.000000e+00> : vector<16xf32>
    %128 = vector.multi_reduction <add>, %127, %cst_46 [1] : vector<16x32xf32> to vector<16xf32>
    %129 = vector.shape_cast %128 : vector<16xf32> to vector<16x1xf32>
    %cst_47 = arith.constant 3.200000e+01 : f32
    %130 = vector.broadcast %cst_47 : f32 to vector<16x1xf32>
    %131 = arith.divf %129, %130 : vector<16x1xf32>
    %132 = arith.mulf %126, %126 : vector<16x1xf32>
    %133 = arith.subf %131, %132 : vector<16x1xf32>
    %134 = vector.broadcast %126 : vector<16x1xf32> to vector<16x32xf32>
    %135 = arith.subf %120, %134 : vector<16x32xf32>
    %cst_48 = arith.constant 9.99999997E-7 : f32
    %136 = vector.broadcast %cst_48 : f32 to vector<16x1xf32>
    %137 = arith.addf %133, %136 : vector<16x1xf32>
    %138 = math.rsqrt %137 : vector<16x1xf32>
    %139 = vector.broadcast %138 : vector<16x1xf32> to vector<16x32xf32>
    %140 = arith.mulf %135, %139 : vector<16x32xf32>
    %141 = vector.broadcast %121 : vector<1x32xf32> to vector<16x32xf32>
    %142 = arith.mulf %140, %141 : vector<16x32xf32>
    %143 = vector.broadcast %122 : vector<1x32xf32> to vector<16x32xf32>
    %144 = arith.addf %142, %143 : vector<16x32xf32>
    %c160 = arith.constant 160 : index
    %c0_49 = arith.constant 0 : index
    %145 = vector.load %arg2[%c160, %c0_49] : memref<256x128xf32, #tpu.memory_space<vmem>>, vector<32x32xf32>
    %cst_50 = arith.constant dense<0.000000e+00> : vector<16x32xf32>
    %146 = tpu.matmul %144, %145, %cst_50 {dimension_numbers = #tpu.dot_dimension_numbers<[1], [0], [0], [1], [0, 0, 1, 1], [], []>} : vector<16x32xf32>, vector<32x32xf32>, vector<16x32xf32> -> vector<16x32xf32>
    %c10 = arith.constant 10 : index
    %c0_51 = arith.constant 0 : index
    %147 = vector.load %arg3[%c10, %c0_51] : memref<16x64xf32, #tpu.memory_space<vmem>>, vector<1x32xf32>
    %148 = vector.broadcast %147 : vector<1x32xf32> to vector<16x32xf32>
    %149 = arith.addf %146, %148 : vector<16x32xf32>
    %c32 = arith.constant 32 : index
    %c0_52 = arith.constant 0 : index
    %150 = vector.load %arg2[%c32, %c0_52] : memref<256x128xf32, #tpu.memory_space<vmem>>, vector<32x64xf32>
    %cst_53 = arith.constant dense<0.000000e+00> : vector<16x64xf32>
    %151 = tpu.matmul %1, %150, %cst_53 {dimension_numbers = #tpu.dot_dimension_numbers<[1], [0], [0], [1], [0, 0, 1, 1], [], []>} : vector<16x32xf32>, vector<32x64xf32>, vector<16x64xf32> -> vector<16x64xf32>
    %152 = vector.extract_strided_slice %151 {offsets = [0, 0], sizes = [16, 32], strides = [1, 1]} : vector<16x64xf32> to vector<16x32xf32>
    %c11 = arith.constant 11 : index
    %c0_54 = arith.constant 0 : index
    %153 = vector.load %arg3[%c11, %c0_54] : memref<16x64xf32, #tpu.memory_space<vmem>>, vector<1x32xf32>
    %154 = vector.broadcast %153 : vector<1x32xf32> to vector<16x32xf32>
    %155 = arith.addf %152, %154 : vector<16x32xf32>
    %156 = vector.extract_strided_slice %151 {offsets = [0, 32], sizes = [16, 32], strides = [1, 1]} : vector<16x64xf32> to vector<16x32xf32>
    %c12 = arith.constant 12 : index
    %c0_55 = arith.constant 0 : index
    %157 = vector.load %arg3[%c12, %c0_55] : memref<16x64xf32, #tpu.memory_space<vmem>>, vector<1x32xf32>
    %158 = vector.broadcast %157 : vector<1x32xf32> to vector<16x32xf32>
    %159 = arith.addf %156, %158 : vector<16x32xf32>
    %160 = vector.extract_strided_slice %149 {offsets = [0, 0], sizes = [16, 8], strides = [1, 1]} : vector<16x32xf32> to vector<16x8xf32>
    %161 = vector.extract_strided_slice %155 {offsets = [0, 0], sizes = [16, 8], strides = [1, 1]} : vector<16x32xf32> to vector<16x8xf32>
    %162 = vector.extract_strided_slice %159 {offsets = [0, 0], sizes = [16, 8], strides = [1, 1]} : vector<16x32xf32> to vector<16x8xf32>
    %cst_56 = arith.constant dense<0.000000e+00> : vector<16x16xf32>
    %163 = tpu.matmul %160, %161, %cst_56 {dimension_numbers = #tpu.dot_dimension_numbers<[1], [1], [0], [0], [0, 0, 1, 0], [], []>} : vector<16x8xf32>, vector<16x8xf32>, vector<16x16xf32> -> vector<16x16xf32>
    %cst_57 = arith.constant 0.353553385 : f32
    %164 = vector.broadcast %cst_57 : f32 to vector<16x16xf32>
    %165 = arith.mulf %163, %164 : vector<16x16xf32>
    %166 = arith.addf %165, %3 : vector<16x16xf32>
    %cst_58 = arith.constant dense<0xFF800000> : vector<16xf32>
    %167 = vector.multi_reduction <maximumf>, %166, %cst_58 [1] : vector<16x16xf32> to vector<16xf32>
    %168 = vector.shape_cast %167 : vector<16xf32> to vector<16x1xf32>
    %169 = vector.broadcast %168 : vector<16x1xf32> to vector<16x16xf32>
    %170 = arith.subf %166, %169 : vector<16x16xf32>
    %171 = math.exp %170 : vector<16x16xf32>
    %cst_59 = arith.constant dense<0.000000e+00> : vector<16xf32>
    %172 = vector.multi_reduction <add>, %171, %cst_59 [1] : vector<16x16xf32> to vector<16xf32>
    %173 = vector.shape_cast %172 : vector<16xf32> to vector<16x1xf32>
    %174 = tpu.reciprocal %173 {approx = true} : vector<16x1xf32> -> vector<16x1xf32>
    %175 = vector.broadcast %174 : vector<16x1xf32> to vector<16x16xf32>
    %176 = arith.mulf %171, %175 : vector<16x16xf32>
    %cst_60 = arith.constant dense<0.000000e+00> : vector<16x8xf32>
    %177 = tpu.matmul %176, %162, %cst_60 {dimension_numbers = #tpu.dot_dimension_numbers<[1], [0], [0], [1], [0, 0, 1, 1], [], []>} : vector<16x16xf32>, vector<16x8xf32>, vector<16x8xf32> -> vector<16x8xf32>
    %178 = vector.extract_strided_slice %149 {offsets = [0, 8], sizes = [16, 8], strides = [1, 1]} : vector<16x32xf32> to vector<16x8xf32>
    %179 = vector.extract_strided_slice %155 {offsets = [0, 8], sizes = [16, 8], strides = [1, 1]} : vector<16x32xf32> to vector<16x8xf32>
    %180 = vector.extract_strided_slice %159 {offsets = [0, 8], sizes = [16, 8], strides = [1, 1]} : vector<16x32xf32> to vector<16x8xf32>
    %cst_61 = arith.constant dense<0.000000e+00> : vector<16x16xf32>
    %181 = tpu.matmul %178, %179, %cst_61 {dimension_numbers = #tpu.dot_dimension_numbers<[1], [1], [0], [0], [0, 0, 1, 0], [], []>} : vector<16x8xf32>, vector<16x8xf32>, vector<16x16xf32> -> vector<16x16xf32>
    %cst_62 = arith.constant 0.353553385 : f32
    %182 = vector.broadcast %cst_62 : f32 to vector<16x16xf32>
    %183 = arith.mulf %181, %182 : vector<16x16xf32>
    %184 = arith.addf %183, %3 : vector<16x16xf32>
    %cst_63 = arith.constant dense<0xFF800000> : vector<16xf32>
    %185 = vector.multi_reduction <maximumf>, %184, %cst_63 [1] : vector<16x16xf32> to vector<16xf32>
    %186 = vector.shape_cast %185 : vector<16xf32> to vector<16x1xf32>
    %187 = vector.broadcast %186 : vector<16x1xf32> to vector<16x16xf32>
    %188 = arith.subf %184, %187 : vector<16x16xf32>
    %189 = math.exp %188 : vector<16x16xf32>
    %cst_64 = arith.constant dense<0.000000e+00> : vector<16xf32>
    %190 = vector.multi_reduction <add>, %189, %cst_64 [1] : vector<16x16xf32> to vector<16xf32>
    %191 = vector.shape_cast %190 : vector<16xf32> to vector<16x1xf32>
    %192 = tpu.reciprocal %191 {approx = true} : vector<16x1xf32> -> vector<16x1xf32>
    %193 = vector.broadcast %192 : vector<16x1xf32> to vector<16x16xf32>
    %194 = arith.mulf %189, %193 : vector<16x16xf32>
    %cst_65 = arith.constant dense<0.000000e+00> : vector<16x8xf32>
    %195 = tpu.matmul %194, %180, %cst_65 {dimension_numbers = #tpu.dot_dimension_numbers<[1], [0], [0], [1], [0, 0, 1, 1], [], []>} : vector<16x16xf32>, vector<16x8xf32>, vector<16x8xf32> -> vector<16x8xf32>
    %196 = vector.extract_strided_slice %149 {offsets = [0, 16], sizes = [16, 8], strides = [1, 1]} : vector<16x32xf32> to vector<16x8xf32>
    %197 = vector.extract_strided_slice %155 {offsets = [0, 16], sizes = [16, 8], strides = [1, 1]} : vector<16x32xf32> to vector<16x8xf32>
    %198 = vector.extract_strided_slice %159 {offsets = [0, 16], sizes = [16, 8], strides = [1, 1]} : vector<16x32xf32> to vector<16x8xf32>
    %cst_66 = arith.constant dense<0.000000e+00> : vector<16x16xf32>
    %199 = tpu.matmul %196, %197, %cst_66 {dimension_numbers = #tpu.dot_dimension_numbers<[1], [1], [0], [0], [0, 0, 1, 0], [], []>} : vector<16x8xf32>, vector<16x8xf32>, vector<16x16xf32> -> vector<16x16xf32>
    %cst_67 = arith.constant 0.353553385 : f32
    %200 = vector.broadcast %cst_67 : f32 to vector<16x16xf32>
    %201 = arith.mulf %199, %200 : vector<16x16xf32>
    %202 = arith.addf %201, %3 : vector<16x16xf32>
    %cst_68 = arith.constant dense<0xFF800000> : vector<16xf32>
    %203 = vector.multi_reduction <maximumf>, %202, %cst_68 [1] : vector<16x16xf32> to vector<16xf32>
    %204 = vector.shape_cast %203 : vector<16xf32> to vector<16x1xf32>
    %205 = vector.broadcast %204 : vector<16x1xf32> to vector<16x16xf32>
    %206 = arith.subf %202, %205 : vector<16x16xf32>
    %207 = math.exp %206 : vector<16x16xf32>
    %cst_69 = arith.constant dense<0.000000e+00> : vector<16xf32>
    %208 = vector.multi_reduction <add>, %207, %cst_69 [1] : vector<16x16xf32> to vector<16xf32>
    %209 = vector.shape_cast %208 : vector<16xf32> to vector<16x1xf32>
    %210 = tpu.reciprocal %209 {approx = true} : vector<16x1xf32> -> vector<16x1xf32>
    %211 = vector.broadcast %210 : vector<16x1xf32> to vector<16x16xf32>
    %212 = arith.mulf %207, %211 : vector<16x16xf32>
    %cst_70 = arith.constant dense<0.000000e+00> : vector<16x8xf32>
    %213 = tpu.matmul %212, %198, %cst_70 {dimension_numbers = #tpu.dot_dimension_numbers<[1], [0], [0], [1], [0, 0, 1, 1], [], []>} : vector<16x16xf32>, vector<16x8xf32>, vector<16x8xf32> -> vector<16x8xf32>
    %214 = vector.extract_strided_slice %149 {offsets = [0, 24], sizes = [16, 8], strides = [1, 1]} : vector<16x32xf32> to vector<16x8xf32>
    %215 = vector.extract_strided_slice %155 {offsets = [0, 24], sizes = [16, 8], strides = [1, 1]} : vector<16x32xf32> to vector<16x8xf32>
    %216 = vector.extract_strided_slice %159 {offsets = [0, 24], sizes = [16, 8], strides = [1, 1]} : vector<16x32xf32> to vector<16x8xf32>
    %cst_71 = arith.constant dense<0.000000e+00> : vector<16x16xf32>
    %217 = tpu.matmul %214, %215, %cst_71 {dimension_numbers = #tpu.dot_dimension_numbers<[1], [1], [0], [0], [0, 0, 1, 0], [], []>} : vector<16x8xf32>, vector<16x8xf32>, vector<16x16xf32> -> vector<16x16xf32>
    %cst_72 = arith.constant 0.353553385 : f32
    %218 = vector.broadcast %cst_72 : f32 to vector<16x16xf32>
    %219 = arith.mulf %217, %218 : vector<16x16xf32>
    %220 = arith.addf %219, %3 : vector<16x16xf32>
    %cst_73 = arith.constant dense<0xFF800000> : vector<16xf32>
    %221 = vector.multi_reduction <maximumf>, %220, %cst_73 [1] : vector<16x16xf32> to vector<16xf32>
    %222 = vector.shape_cast %221 : vector<16xf32> to vector<16x1xf32>
    %223 = vector.broadcast %222 : vector<16x1xf32> to vector<16x16xf32>
    %224 = arith.subf %220, %223 : vector<16x16xf32>
    %225 = math.exp %224 : vector<16x16xf32>
    %cst_74 = arith.constant dense<0.000000e+00> : vector<16xf32>
    %226 = vector.multi_reduction <add>, %225, %cst_74 [1] : vector<16x16xf32> to vector<16xf32>
    %227 = vector.shape_cast %226 : vector<16xf32> to vector<16x1xf32>
    %228 = tpu.reciprocal %227 {approx = true} : vector<16x1xf32> -> vector<16x1xf32>
    %229 = vector.broadcast %228 : vector<16x1xf32> to vector<16x16xf32>
    %230 = arith.mulf %225, %229 : vector<16x16xf32>
    %cst_75 = arith.constant dense<0.000000e+00> : vector<16x8xf32>
    %231 = tpu.matmul %230, %216, %cst_75 {dimension_numbers = #tpu.dot_dimension_numbers<[1], [0], [0], [1], [0, 0, 1, 1], [], []>} : vector<16x16xf32>, vector<16x8xf32>, vector<16x8xf32> -> vector<16x8xf32>
    %232 = tpu.concatenate %177, %195, %213, %231 in 1 : vector<16x8xf32>, vector<16x8xf32>, vector<16x8xf32>, vector<16x8xf32> -> vector<16x32xf32>
    %c224 = arith.constant 224 : index
    %c0_76 = arith.constant 0 : index
    %233 = vector.load %arg2[%c224, %c0_76] : memref<256x128xf32, #tpu.memory_space<vmem>>, vector<32x32xf32>
    %cst_77 = arith.constant dense<0.000000e+00> : vector<16x32xf32>
    %234 = tpu.matmul %232, %233, %cst_77 {dimension_numbers = #tpu.dot_dimension_numbers<[1], [0], [0], [1], [0, 0, 1, 1], [], []>} : vector<16x32xf32>, vector<32x32xf32>, vector<16x32xf32> -> vector<16x32xf32>
    %235 = arith.addf %120, %234 : vector<16x32xf32>
    %c13 = arith.constant 13 : index
    %c0_78 = arith.constant 0 : index
    %236 = vector.load %arg3[%c13, %c0_78] : memref<16x64xf32, #tpu.memory_space<vmem>>, vector<1x32xf32>
    %237 = vector.broadcast %236 : vector<1x32xf32> to vector<16x32xf32>
    %238 = arith.addf %235, %237 : vector<16x32xf32>
    %c4 = arith.constant 4 : index
    %c0_79 = arith.constant 0 : index
    %239 = vector.load %arg3[%c4, %c0_79] : memref<16x64xf32, #tpu.memory_space<vmem>>, vector<1x32xf32>
    %c5 = arith.constant 5 : index
    %c0_80 = arith.constant 0 : index
    %240 = vector.load %arg3[%c5, %c0_80] : memref<16x64xf32, #tpu.memory_space<vmem>>, vector<1x32xf32>
    %cst_81 = arith.constant dense<0.000000e+00> : vector<16xf32>
    %241 = vector.multi_reduction <add>, %238, %cst_81 [1] : vector<16x32xf32> to vector<16xf32>
    %242 = vector.shape_cast %241 : vector<16xf32> to vector<16x1xf32>
    %cst_82 = arith.constant 3.200000e+01 : f32
    %243 = vector.broadcast %cst_82 : f32 to vector<16x1xf32>
    %244 = arith.divf %242, %243 : vector<16x1xf32>
    %245 = arith.mulf %238, %238 : vector<16x32xf32>
    %cst_83 = arith.constant dense<0.000000e+00> : vector<16xf32>
    %246 = vector.multi_reduction <add>, %245, %cst_83 [1] : vector<16x32xf32> to vector<16xf32>
    %247 = vector.shape_cast %246 : vector<16xf32> to vector<16x1xf32>
    %cst_84 = arith.constant 3.200000e+01 : f32
    %248 = vector.broadcast %cst_84 : f32 to vector<16x1xf32>
    %249 = arith.divf %247, %248 : vector<16x1xf32>
    %250 = arith.mulf %244, %244 : vector<16x1xf32>
    %251 = arith.subf %249, %250 : vector<16x1xf32>
    %252 = vector.broadcast %244 : vector<16x1xf32> to vector<16x32xf32>
    %253 = arith.subf %238, %252 : vector<16x32xf32>
    %cst_85 = arith.constant 9.99999997E-7 : f32
    %254 = vector.broadcast %cst_85 : f32 to vector<16x1xf32>
    %255 = arith.addf %251, %254 : vector<16x1xf32>
    %256 = math.rsqrt %255 : vector<16x1xf32>
    %257 = vector.broadcast %256 : vector<16x1xf32> to vector<16x32xf32>
    %258 = arith.mulf %253, %257 : vector<16x32xf32>
    %259 = vector.broadcast %239 : vector<1x32xf32> to vector<16x32xf32>
    %260 = arith.mulf %258, %259 : vector<16x32xf32>
    %261 = vector.broadcast %240 : vector<1x32xf32> to vector<16x32xf32>
    %262 = arith.addf %260, %261 : vector<16x32xf32>
    %c64 = arith.constant 64 : index
    %c0_86 = arith.constant 0 : index
    %263 = vector.load %arg2[%c64, %c0_86] : memref<256x128xf32, #tpu.memory_space<vmem>>, vector<32x64xf32>
    %cst_87 = arith.constant dense<0.000000e+00> : vector<16x64xf32>
    %264 = tpu.matmul %262, %263, %cst_87 {dimension_numbers = #tpu.dot_dimension_numbers<[1], [0], [0], [1], [0, 0, 1, 1], [], []>} : vector<16x32xf32>, vector<32x64xf32>, vector<16x64xf32> -> vector<16x64xf32>
    %c14 = arith.constant 14 : index
    %c0_88 = arith.constant 0 : index
    %265 = vector.load %arg3[%c14, %c0_88] : memref<16x64xf32, #tpu.memory_space<vmem>>, vector<1x64xf32>
    %266 = vector.broadcast %265 : vector<1x64xf32> to vector<16x64xf32>
    %267 = arith.addf %264, %266 : vector<16x64xf32>
    %cst_89 = arith.constant 0.000000e+00 : f32
    %268 = vector.broadcast %cst_89 : f32 to vector<16x64xf32>
    %269 = arith.maximumf %267, %268 : vector<16x64xf32>
    %c96 = arith.constant 96 : index
    %c0_90 = arith.constant 0 : index
    %270 = vector.load %arg2[%c96, %c0_90] : memref<256x128xf32, #tpu.memory_space<vmem>>, vector<64x32xf32>
    %cst_91 = arith.constant dense<0.000000e+00> : vector<16x32xf32>
    %271 = tpu.matmul %269, %270, %cst_91 {dimension_numbers = #tpu.dot_dimension_numbers<[1], [0], [0], [1], [0, 0, 1, 1], [], []>} : vector<16x64xf32>, vector<64x32xf32>, vector<16x32xf32> -> vector<16x32xf32>
    %272 = arith.addf %238, %271 : vector<16x32xf32>
    %c15 = arith.constant 15 : index
    %c0_92 = arith.constant 0 : index
    %273 = vector.load %arg3[%c15, %c0_92] : memref<16x64xf32, #tpu.memory_space<vmem>>, vector<1x32xf32>
    %274 = vector.broadcast %273 : vector<1x32xf32> to vector<16x32xf32>
    %275 = arith.addf %272, %274 : vector<16x32xf32>
    %c0_93 = arith.constant 0 : index
    %c0_94 = arith.constant 0 : index
    %276 = vector.load %arg4[%c0_93, %c0_94] : memref<16x32xf32, #tpu.memory_space<vmem>>, vector<16x32xf32>
    tpu.vector_store %arg4[%c0_93, %c0_94], %275 {strides = array<i32>} : memref<16x32xf32, #tpu.memory_space<vmem>>, vector<16x32xf32>,
    return
  }
}

</mosaic_0001>

<llo_original>
// kernel: decoder_layer.1
$region0: #{decoder_layer.1}
  #allocation0 [shape = 'u32[]', space=smem, size = 0x4, offset = 0x4, fixed_abs, tag = 'smem constant byte address 0x4 - core index']
  #allocation1 [shape = 'u32[144,128]{1,0:T(1,128)}', space=vmem, size = 0x12000, scoped, tag = 'internal scratch']
  %s0 = inlined_call_operand.vmem [shape: f32[32,32], index: 0, kind: input, shape index: {}]
  %s1 = inlined_call_operand.vmem [shape: f32[32,16], index: 1, kind: input, shape index: {}]
  %s2 = inlined_call_operand.vmem [shape: f32[256,128], index: 2, kind: input, shape index: {}]
  %s3 = inlined_call_operand.vmem [shape: f32[16,64], index: 3, kind: input, shape index: {}]
  %s4 = inlined_call_operand.hbm [shape: f32[16,32], index: 4, kind: output, shape index: {}]
  %s5 = sld [smem:[#allocation0]]
  $region26: #{decoder_layer.1} parent=0
    _
  %s7 = ssub.s32 1, %s5
  %s8 = scalar_select 0, %s7, %s5
  $region1: #{decoder_layer.1} parent=0
    #allocation2 [shape = 'u8[8192]{0}', space=vmem, size = 0x2000, scoped, tag = 'output window, operand 0, single buffered']
    #allocation3 [shape = 's32[1]{0}', space=sflag, size = 0x4, scoped, tag = 'scoped memory for decoder_layer.1']
    %9 = vsyncpa [#allocation3], 0
    // Predicated region
    $region2: #{decoder_layer.1} parent=1 // pred_check
      _
    $region3: #{decoder_layer.1} parent=1 // pred_check_branch
      %11 = sbr.rel (0) target = $region5
    $region4: #{decoder_layer.1} parent=1 // pred_region
      _
    $region5: #{decoder_layer.1} parent=1 // pred_fallthru
      _
    // Predicated region
    $region6: #{decoder_layer.1} parent=1 // pred_check
      _
    $region7: #{decoder_layer.1} parent=1 // pred_check_branch
      %13 = sbr.rel (0) target = $region9
    $region8: #{decoder_layer.1} parent=1 // pred_region
      _
    $region9: #{decoder_layer.1} parent=1 // pred_fallthru
      _
    // Predicated region
    $region10: #{decoder_layer.1} parent=1 // pred_check
      _
    $region11: #{decoder_layer.1} parent=1 // pred_check_branch
      %15 = sbr.rel (0) target = $region13
    $region12: #{decoder_layer.1} parent=1 // pred_region
      _
    $region13: #{decoder_layer.1} parent=1 // pred_fallthru
      _
    // Predicated region
    $region14: #{decoder_layer.1} parent=1 // pred_check
      _
    $region15: #{decoder_layer.1} parent=1 // pred_check_branch
      %17 = sbr.rel (0) target = $region17
    $region16: #{decoder_layer.1} parent=1 // pred_region
      _
    $region17: #{decoder_layer.1} parent=1 // pred_fallthru
      _
    %v18 = vld [vmem:[%s0] sm:$0xff]
    %v19 = vld [vmem:[%s0 + $0x8] sm:$0xff]
    %v20 = vld [vmem:[%s0 + $0x10] sm:$0xff]
    %v21 = vld [vmem:[%s0 + $0x18] sm:$0xff]
    %v22 = vld [vmem:[%s1] sm:$0xff]
    %v23 = vld [vmem:[%s1 + $0x8] sm:$0xff]
    %v24 = vld [vmem:[%s1 + $0x10] sm:$0xff]
    %v25 = vld [vmem:[%s1 + $0x18] sm:$0xff]
    %v26 = vld [vmem:[%s3] sm:$0x1]
    %v27 = vld [vmem:[%s3 + $0x1] sm:$0x1]
    %vm28 = vcmask 261120
    %v29 = vsel %vm28, %v18, 0.0
    %30 = vadd.xlane.f32.xlu0 %v29
    %v31 = vpop.xlane.xlu0 %30
    %v32 = vsel %vm28, %v19, 0.0
    %33 = vadd.xlane.f32.xlu0 %v32
    %v34 = vpop.xlane.xlu0 %33
    %v35 = vrcp.pop 32.0
    %v36 = vmul.f32 %v31, %v35
    %v37 = vmul.f32 %v34, %v35
    %v38 = vmul.f32 %v18, %v18
    %v39 = vmul.f32 %v19, %v19
    %v40 = vsel %vm28, %v38, 0.0
    %41 = vadd.xlane.f32.xlu0 %v40
    %v42 = vpop.xlane.xlu0 %41
    %v43 = vsel %vm28, %v39, 0.0
    %44 = vadd.xlane.f32.xlu0 %v43
    %v45 = vpop.xlane.xlu0 %44
    %v46 = vmul.f32 %v42, %v35
    %v47 = vmul.f32 %v45, %v35
    %v48 = vmul.f32 %v36, %v36
    %v49 = vmul.f32 %v37, %v37
    %v50 = vsub.f32 %v46, %v48
    %v51 = vsub.f32 %v47, %v49
    %v52 = vsub.f32 %v18, %v36
    %v53 = vsub.f32 %v19, %v37
    %v54 = vadd.f32 %v50, 1e-06
    %v55 = vadd.f32 %v51, 1e-06
    %v56 = vrsqrt.pop %v54
    %v57 = vrsqrt.pop %v55
    %v58 = vmul.f32 %v52, %v56
    %v59 = vmul.f32 %v53, %v57
    %v60 = vlaneseq
    %v61 = vshrl.u32 %v60, 7
    %v62 = vsub.s32 0, %v61
    %v63 = vrot.slane %v26, %v62
    %v64 = vmul.f32 %v58, %v63
    %v65 = vmul.f32 %v59, %v63
    %v66 = vlaneseq
    %v67 = vshrl.u32 %v66, 7
    %v68 = vsub.s32 0, %v67
    %v69 = vrot.slane %v27, %v68
    %v70 = vadd.f32 %v64, %v69
    %v71 = vadd.f32 %v65, %v69
    %v72 = vld [vmem:[%s2] sm:$0xff]
    %v73 = vld [vmem:[%s2 + $0x8] sm:$0xff]
    %v74 = vld [vmem:[%s2 + $0x10] sm:$0xff]
    %v75 = vld [vmem:[%s2 + $0x18] sm:$0xff]
    %v77 = vsel %vm28, %v70, 0
    %v80 = vsel %vm28, %v71, 0
    %82 = vmatprep.subr.mxu0 0.0
    %83 = vmatpush1.msra.mxu0 %v72
    %84 = vmatprep.subr.mxu0 0.0
    %85 = vmatpush1.msra.mxu0 %v73
    %86 = vmatprep.subr.mxu0 0.0
    %87 = vmatpush1.msra.mxu0 %v74
    %88 = vmatprep.subr.mxu0 0.0
    %89 = vmatpush1.msra.mxu0 %v75
    %90 = vmatprep.subr.mxu0 0.0
    %91 = vmatpush1.msra.mxu0 0.0
    %92 = vmatprep.subr.mxu0 0.0
    %93 = vmatpush1.msra.mxu0 0.0
    %94 = vmatprep.subr.mxu0 0.0
    %95 = vmatpush1.msra.mxu0 0.0
    %96 = vmatprep.subr.mxu0 0.0
    %97 = vmatpush1.msra.mxu0 0.0
    %98 = vmatprep.subr.mxu0 0.0
    %99 = vmatpush1.msra.mxu0 0.0
    %100 = vmatprep.subr.mxu0 0.0
    %101 = vmatpush1.msra.mxu0 0.0
    %102 = vmatprep.subr.mxu0 0.0
    %103 = vmatpush1.msra.mxu0 0.0
    %104 = vmatprep.subr.mxu0 0.0
    %105 = vmatpush1.msra.mxu0 0.0
    %106 = vmatprep.subr.mxu0 0.0
    %107 = vmatpush1.msra.mxu0 0.0
    %108 = vmatprep.subr.mxu0 0.0
    %109 = vmatpush1.msra.mxu0 0.0
    %110 = vmatprep.subr.mxu0 0.0
    %111 = vmatpush1.msra.mxu0 0.0
    %112 = vmatprep.subr.mxu0 0.0
    %113 = vmatpush1.msra.mxu0 0.0
    %114 = vmatprep.subr.mxu0 0.0
    %115 = vmatpush1.msra.mxu0 0.0
    %116 = vmatprep.subr.mxu0 0.0
    %117 = vmatpush1.msra.mxu0 0.0
    %118 = vmatprep.subr.mxu0 0.0
    %119 = vmatpush1.msra.mxu0 0.0
    %120 = vmatprep.subr.mxu0 0.0
    %121 = vmatpush1.msra.mxu0 0.0
    %122 = vmatprep.subr.mxu0 0.0
    %123 = vmatpush1.msra.mxu0 0.0
    %124 = vmatprep.subr.mxu0 0.0
    %125 = vmatpush1.msra.mxu0 0.0
    %126 = vmatprep.subr.mxu0 0.0
    %127 = vmatpush1.msra.mxu0 0.0
    %128 = vmatprep.subr.mxu0 0.0
    %129 = vmatpush1.msra.mxu0 0.0
    %130 = vmatprep.subr.mxu0 0.0
    %131 = vmatpush1.msra.mxu0 0.0
    %132 = vmatprep.subr.mxu0 0.0
    %133 = vmatpush1.msra.mxu0 0.0
    %134 = vmatprep.subr.mxu0 0.0
    %135 = vmatpush1.msra.mxu0 0.0
    %136 = vmatprep.subr.mxu0 0.0
    %137 = vmatpush1.msra.mxu0 0.0
    %138 = vmatprep.subr.mxu0 0.0
    %139 = vmatpush1.msra.mxu0 0.0
    %140 = vmatprep.subr.mxu0 0.0
    %141 = vmatpush1.msra.mxu0 0.0
    %142 = vmatprep.subr.mxu0 0.0
    %143 = vmatpush1.msra.mxu0 0.0
    %144 = vmatprep.subr.mxu0 0.0
    %145 = vmatpush1.msra.mxu0 0.0
    %146 = vmatprep.mubr.f32.mxu0 0.0
    %147 = vmatmul.mubr.f32.gmra.mrb[0].mxu0 %v77
    %v148 = vpop.f32.mrb[0].mxu0
    %v149 = vadd.f32 0.0, %v148
    %v150 = vpop.f32.mrb[0].mxu0
    %151 = vmatprep.mubr.f32.mxu0 0.0
    %152 = vmatmul.mubr.f32.gmra.mrb[0].mxu0 %v80
    %v153 = vpop.f32.mrb[0].mxu0
    %v154 = vadd.f32 0.0, %v153
    %v155 = vpop.f32.mrb[0].mxu0
    %156 = vdwg.mxu0
    %v157 = vld [vmem:[%s3 + $0x6] sm:$0x1]
    %v158 = vlaneseq
    %v159 = vshrl.u32 %v158, 7
    %v160 = vsub.s32 0, %v159
    %v161 = vrot.slane %v157, %v160
    %v162 = vadd.f32 %v149, %v161
    %v163 = vadd.f32 %v154, %v161
    %v164 = vld [vmem:[%s3 + $0x7] sm:$0x1]
    %v165 = vlaneseq
    %v166 = vshrl.u32 %v165, 7
    %v167 = vsub.s32 0, %v166
    %v168 = vrot.slane %v164, %v167
    %170 = vrot.lane.b32.xlu0 %v168, 32
    %v171 = vpop.permute.xlu0 %170
    %v173 = vadd.f32 %v149, %v171
    %v174 = vadd.f32 %v154, %v171
    %v175 = vld [vmem:[%s3 + $0x8] sm:$0x1]
    %v176 = vlaneseq
    %v177 = vshrl.u32 %v176, 7
    %v178 = vsub.s32 0, %v177
    %v179 = vrot.slane %v175, %v178
    %181 = vrot.lane.b32.xlu0 %v179, 64
    %v182 = vpop.permute.xlu0 %181
    %v184 = vadd.f32 %v149, %v182
    %v185 = vadd.f32 %v154, %v182
    %188 = vrot.lane.b32.xlu0 %v173, 96
    %v189 = vpop.permute.xlu0 %188
    %190 = vrot.lane.b32.xlu0 %v174, 96
    %v191 = vpop.permute.xlu0 %190
    %vm192 = vcmask 64512
    %v194 = vsel %vm192, %v162, 0
    %v197 = vsel %vm192, %v163, 0
    %v199 = vsel %vm192, %v189, 0
    %v201 = vsel %vm192, %v191, 0
    %203 = vmatprep.subr.mxu0 0.0
    %204 = vmatpush1.xpose.msra.mxu0 %v199
    %205 = vmatprep.subr.mxu0 0.0
    %206 = vmatpush1.xpose.msra.mxu0 %v201
    %207 = vmatprep.subr.mxu0 0.0
    %208 = vmatpush1.xpose.msra.mxu0 0.0
    %209 = vmatprep.subr.mxu0 0.0
    %210 = vmatpush1.xpose.msra.mxu0 0.0
    %211 = vmatprep.subr.mxu0 0.0
    %212 = vmatpush1.xpose.msra.mxu0 0.0
    %213 = vmatprep.subr.mxu0 0.0
    %214 = vmatpush1.xpose.msra.mxu0 0.0
    %215 = vmatprep.subr.mxu0 0.0
    %216 = vmatpush1.xpose.msra.mxu0 0.0
    %217 = vmatprep.subr.mxu0 0.0
    %218 = vmatpush1.xpose.msra.mxu0 0.0
    %219 = vmatprep.subr.mxu0 0.0
    %220 = vmatpush1.xpose.msra.mxu0 0.0
    %221 = vmatprep.subr.mxu0 0.0
    %222 = vmatpush1.xpose.msra.mxu0 0.0
    %223 = vmatprep.subr.mxu0 0.0
    %224 = vmatpush1.xpose.msra.mxu0 0.0
    %225 = vmatprep.subr.mxu0 0.0
    %226 = vmatpush1.xpose.msra.mxu0 0.0
    %227 = vmatprep.subr.mxu0 0.0
    %228 = vmatpush1.xpose.msra.mxu0 0.0
    %229 = vmatprep.subr.mxu0 0.0
    %230 = vmatpush1.xpose.msra.mxu0 0.0
    %231 = vmatprep.subr.mxu0 0.0
    %232 = vmatpush1.xpose.msra.mxu0 0.0
    %233 = vmatprep.subr.mxu0 0.0
    %234 = vmatpush1.xpose.msra.mxu0 0.0
    %235 = vmatprep.subr.mxu0 0.0
    %236 = vmatpush1.xpose.msra.mxu0 0.0
    %237 = vmatprep.subr.mxu0 0.0
    %238 = vmatpush1.xpose.msra.mxu0 0.0
    %239 = vmatprep.subr.mxu0 0.0
    %240 = vmatpush1.xpose.msra.mxu0 0.0
    %241 = vmatprep.subr.mxu0 0.0
    %242 = vmatpush1.xpose.msra.mxu0 0.0
    %243 = vmatprep.subr.mxu0 0.0
    %244 = vmatpush1.xpose.msra.mxu0 0.0
    %245 = vmatprep.subr.mxu0 0.0
    %246 = vmatpush1.xpose.msra.mxu0 0.0
    %247 = vmatprep.subr.mxu0 0.0
    %248 = vmatpush1.xpose.msra.mxu0 0.0
    %249 = vmatprep.subr.mxu0 0.0
    %250 = vmatpush1.xpose.msra.mxu0 0.0
    %251 = vmatprep.subr.mxu0 0.0
    %252 = vmatpush1.xpose.msra.mxu0 0.0
    %253 = vmatprep.subr.mxu0 0.0
    %254 = vmatpush1.xpose.msra.mxu0 0.0
    %255 = vmatprep.subr.mxu0 0.0
    %256 = vmatpush1.xpose.msra.mxu0 0.0
    %257 = vmatprep.subr.mxu0 0.0
    %258 = vmatpush1.xpose.msra.mxu0 0.0
    %259 = vmatprep.subr.mxu0 0.0
    %260 = vmatpush1.xpose.msra.mxu0 0.0
    %261 = vmatprep.subr.mxu0 0.0
    %262 = vmatpush1.xpose.msra.mxu0 0.0
    %263 = vmatprep.subr.mxu0 0.0
    %264 = vmatpush1.xpose.msra.mxu0 0.0
    %265 = vmatprep.subr.mxu0 0.0
    %266 = vmatpush1.xpose.msra.mxu0 0.0
    %267 = vmatprep.mubr.f32.mxu0 0.0
    %268 = vmatmul.mubr.f32.gmra.mrb[0].mxu0 %v194
    %v269 = vpop.f32.mrb[0].mxu0
    %v270 = vadd.f32 0.0, %v269
    %v271 = vpop.f32.mrb[0].mxu0
    %272 = vmatprep.mubr.f32.mxu0 0.0
    %273 = vmatmul.mubr.f32.gmra.mrb[0].mxu0 %v197
    %v274 = vpop.f32.mrb[0].mxu0
    %v275 = vadd.f32 0.0, %v274
    %v276 = vpop.f32.mrb[0].mxu0
    %277 = vdwg.mxu0
    %v278 = vmul.f32 %v270, 0.35355338
    %v279 = vmul.f32 %v275, 0.35355338
    %v280 = vadd.f32 %v278, %v22
    %v281 = vadd.f32 %v279, %v23
    %vm282 = vcmask 130048
    %v283 = vsel %vm282, %v280, -inf
    %284 = vmax.xlane.f32.xlu0 %v283
    %v285 = vpop.xlane.xlu0 %284
    %v286 = vsel %vm282, %v281, -inf
    %287 = vmax.xlane.f32.xlu0 %v286
    %v288 = vpop.xlane.xlu0 %287
    %v289 = vsub.f32 %v280, %v285
    %v290 = vsub.f32 %v281, %v288
    %v291 = vmul.f32 %v289, 1.442695
    %v292 = vpow.pop %v291
    %v293 = vmul.f32 %v290, 1.442695
    %v294 = vpow.pop %v293
    %v295 = vsel %vm282, %v292, 0.0
    %296 = vadd.xlane.f32.xlu0 %v295
    %v297 = vpop.xlane.xlu0 %296
    %v298 = vsel %vm282, %v294, 0.0
    %299 = vadd.xlane.f32.xlu0 %v298
    %v300 = vpop.xlane.xlu0 %299
    %v301 = vrcp.pop %v297
    %v302 = vrcp.pop %v300
    %v303 = vmul.f32 %v292, %v301
    %v304 = vmul.f32 %v294, %v302
    %307 = vrot.lane.b32.xlu0 %v184, 64
    %v308 = vpop.permute.xlu0 %307
    %309 = vrot.lane.b32.xlu0 %v185, 64
    %v310 = vpop.permute.xlu0 %309
    %v314 = vsel %vm282, %v303, 0
    %v317 = vsel %vm282, %v304, 0
    %319 = vmatprep.subr.mxu0 0.0
    %320 = vmatpush1.msra.mxu0 %v308
    %321 = vmatprep.subr.mxu0 0.0
    %322 = vmatpush1.msra.mxu0 %v310
    %323 = vmatprep.subr.mxu0 0.0
    %324 = vmatpush1.msra.mxu0 0.0
    %325 = vmatprep.subr.mxu0 0.0
    %326 = vmatpush1.msra.mxu0 0.0
    %327 = vmatprep.subr.mxu0 0.0
    %328 = vmatpush1.msra.mxu0 0.0
    %329 = vmatprep.subr.mxu0 0.0
    %330 = vmatpush1.msra.mxu0 0.0
    %331 = vmatprep.subr.mxu0 0.0
    %332 = vmatpush1.msra.mxu0 0.0
    %333 = vmatprep.subr.mxu0 0.0
    %334 = vmatpush1.msra.mxu0 0.0
    %335 = vmatprep.subr.mxu0 0.0
    %336 = vmatpush1.msra.mxu0 0.0
    %337 = vmatprep.subr.mxu0 0.0
    %338 = vmatpush1.msra.mxu0 0.0
    %339 = vmatprep.subr.mxu0 0.0
    %340 = vmatpush1.msra.mxu0 0.0
    %341 = vmatprep.subr.mxu0 0.0
    %342 = vmatpush1.msra.mxu0 0.0
    %343 = vmatprep.subr.mxu0 0.0
    %344 = vmatpush1.msra.mxu0 0.0
    %345 = vmatprep.subr.mxu0 0.0
    %346 = vmatpush1.msra.mxu0 0.0
    %347 = vmatprep.subr.mxu0 0.0
    %348 = vmatpush1.msra.mxu0 0.0
    %349 = vmatprep.subr.mxu0 0.0
    %350 = vmatpush1.msra.mxu0 0.0
    %351 = vmatprep.subr.mxu0 0.0
    %352 = vmatpush1.msra.mxu0 0.0
    %353 = vmatprep.subr.mxu0 0.0
    %354 = vmatpush1.msra.mxu0 0.0
    %355 = vmatprep.subr.mxu0 0.0
    %356 = vmatpush1.msra.mxu0 0.0
    %357 = vmatprep.subr.mxu0 0.0
    %358 = vmatpush1.msra.mxu0 0.0
    %359 = vmatprep.subr.mxu0 0.0
    %360 = vmatpush1.msra.mxu0 0.0
    %361 = vmatprep.subr.mxu0 0.0
    %362 = vmatpush1.msra.mxu0 0.0
    %363 = vmatprep.subr.mxu0 0.0
    %364 = vmatpush1.msra.mxu0 0.0
    %365 = vmatprep.subr.mxu0 0.0
    %366 = vmatpush1.msra.mxu0 0.0
    %367 = vmatprep.subr.mxu0 0.0
    %368 = vmatpush1.msra.mxu0 0.0
    %369 = vmatprep.subr.mxu0 0.0
    %370 = vmatpush1.msra.mxu0 0.0
    %371 = vmatprep.subr.mxu0 0.0
    %372 = vmatpush1.msra.mxu0 0.0
    %373 = vmatprep.subr.mxu0 0.0
    %374 = vmatpush1.msra.mxu0 0.0
    %375 = vmatprep.subr.mxu0 0.0
    %376 = vmatpush1.msra.mxu0 0.0
    %377 = vmatprep.subr.mxu0 0.0
    %378 = vmatpush1.msra.mxu0 0.0
    %379 = vmatprep.subr.mxu0 0.0
    %380 = vmatpush1.msra.mxu0 0.0
    %381 = vmatprep.subr.mxu0 0.0
    %382 = vmatpush1.msra.mxu0 0.0
    %383 = vmatprep.mubr.f32.mxu0 0.0
    %384 = vmatmul.mubr.f32.gmra.mrb[0].mxu0 %v314
    %v385 = vpop.f32.mrb[0].mxu0
    %v386 = vadd.f32 0.0, %v385
    %v387 = vpop.f32.mrb[0].mxu0
    %388 = vmatprep.mubr.f32.mxu0 0.0
    %389 = vmatmul.mubr.f32.gmra.mrb[0].mxu0 %v317
    %v390 = vpop.f32.mrb[0].mxu0
    %v391 = vadd.f32 0.0, %v390
    %v392 = vpop.f32.mrb[0].mxu0
    %393 = vdwg.mxu0
    %394 = vrot.lane.b32.xlu0 %v162, 120
    %v395 = vpop.permute.xlu0 %394
    %396 = vrot.lane.b32.xlu0 %v163, 120
    %v397 = vpop.permute.xlu0 %396
    %398 = vrot.lane.b32.xlu0 %v173, 88
    %v399 = vpop.permute.xlu0 %398
    %400 = vrot.lane.b32.xlu0 %v174, 88
    %v401 = vpop.permute.xlu0 %400
    %v402 = vsel %vm192, %v395, 0
    %v404 = vsel %vm192, %v397, 0
    %v406 = vsel %vm192, %v399, 0
    %v408 = vsel %vm192, %v401, 0
    %410 = vmatprep.subr.mxu0 0.0
    %411 = vmatpush1.xpose.msra.mxu0 %v406
    %412 = vmatprep.subr.mxu0 0.0
    %413 = vmatpush1.xpose.msra.mxu0 %v408
    %414 = vmatprep.subr.mxu0 0.0
    %415 = vmatpush1.xpose.msra.mxu0 0.0
    %416 = vmatprep.subr.mxu0 0.0
    %417 = vmatpush1.xpose.msra.mxu0 0.0
    %418 = vmatprep.subr.mxu0 0.0
    %419 = vmatpush1.xpose.msra.mxu0 0.0
    %420 = vmatprep.subr.mxu0 0.0
    %421 = vmatpush1.xpose.msra.mxu0 0.0
    %422 = vmatprep.subr.mxu0 0.0
    %423 = vmatpush1.xpose.msra.mxu0 0.0
    %424 = vmatprep.subr.mxu0 0.0
    %425 = vmatpush1.xpose.msra.mxu0 0.0
    %426 = vmatprep.subr.mxu0 0.0
    %427 = vmatpush1.xpose.msra.mxu0 0.0
    %428 = vmatprep.subr.mxu0 0.0
    %429 = vmatpush1.xpose.msra.mxu0 0.0
    %430 = vmatprep.subr.mxu0 0.0
    %431 = vmatpush1.xpose.msra.mxu0 0.0
    %432 = vmatprep.subr.mxu0 0.0
    %433 = vmatpush1.xpose.msra.mxu0 0.0
    %434 = vmatprep.subr.mxu0 0.0
    %435 = vmatpush1.xpose.msra.mxu0 0.0
    %436 = vmatprep.subr.mxu0 0.0
    %437 = vmatpush1.xpose.msra.mxu0 0.0
    %438 = vmatprep.subr.mxu0 0.0
    %439 = vmatpush1.xpose.msra.mxu0 0.0
    %440 = vmatprep.subr.mxu0 0.0
    %441 = vmatpush1.xpose.msra.mxu0 0.0
    %442 = vmatprep.subr.mxu0 0.0
    %443 = vmatpush1.xpose.msra.mxu0 0.0
    %444 = vmatprep.subr.mxu0 0.0
    %445 = vmatpush1.xpose.msra.mxu0 0.0
    %446 = vmatprep.subr.mxu0 0.0
    %447 = vmatpush1.xpose.msra.mxu0 0.0
    %448 = vmatprep.subr.mxu0 0.0
    %449 = vmatpush1.xpose.msra.mxu0 0.0
    %450 = vmatprep.subr.mxu0 0.0
    %451 = vmatpush1.xpose.msra.mxu0 0.0
    %452 = vmatprep.subr.mxu0 0.0
    %453 = vmatpush1.xpose.msra.mxu0 0.0
    %454 = vmatprep.subr.mxu0 0.0
    %455 = vmatpush1.xpose.msra.mxu0 0.0
    %456 = vmatprep.subr.mxu0 0.0
    %457 = vmatpush1.xpose.msra.mxu0 0.0
    %458 = vmatprep.subr.mxu0 0.0
    %459 = vmatpush1.xpose.msra.mxu0 0.0
    %460 = vmatprep.subr.mxu0 0.0
    %461 = vmatpush1.xpose.msra.mxu0 0.0
    %462 = vmatprep.subr.mxu0 0.0
    %463 = vmatpush1.xpose.msra.mxu0 0.0
    %464 = vmatprep.subr.mxu0 0.0
    %465 = vmatpush1.xpose.msra.mxu0 0.0
    %466 = vmatprep.subr.mxu0 0.0
    %467 = vmatpush1.xpose.msra.mxu0 0.0
    %468 = vmatprep.subr.mxu0 0.0
    %469 = vmatpush1.xpose.msra.mxu0 0.0
    %470 = vmatprep.subr.mxu0 0.0
    %471 = vmatpush1.xpose.msra.mxu0 0.0
    %472 = vmatprep.subr.mxu0 0.0
    %473 = vmatpush1.xpose.msra.mxu0 0.0
    %474 = vmatprep.mubr.f32.mxu0 0.0
    %475 = vmatmul.mubr.f32.gmra.mrb[0].mxu0 %v402
    %v476 = vpop.f32.mrb[0].mxu0
    %v477 = vadd.f32 0.0, %v476
    %v478 = vpop.f32.mrb[0].mxu0
    %479 = vmatprep.mubr.f32.mxu0 0.0
    %480 = vmatmul.mubr.f32.gmra.mrb[0].mxu0 %v404
    %v481 = vpop.f32.mrb[0].mxu0
    %v482 = vadd.f32 0.0, %v481
    %v483 = vpop.f32.mrb[0].mxu0
    %484 = vdwg.mxu0
    %v485 = vmul.f32 %v477, 0.35355338
    %v486 = vmul.f32 %v482, 0.35355338
    %v487 = vadd.f32 %v485, %v22
    %v488 = vadd.f32 %v486, %v23
    %v489 = vsel %vm282, %v487, -inf
    %490 = vmax.xlane.f32.xlu0 %v489
    %v491 = vpop.xlane.xlu0 %490
    %v492 = vsel %vm282, %v488, -inf
    %493 = vmax.xlane.f32.xlu0 %v492
    %v494 = vpop.xlane.xlu0 %493
    %v495 = vsub.f32 %v487, %v491
    %v496 = vsub.f32 %v488, %v494
    %v497 = vmul.f32 %v495, 1.442695
    %v498 = vpow.pop %v497
    %v499 = vmul.f32 %v496, 1.442695
    %v500 = vpow.pop %v499
    %v501 = vsel %vm282, %v498, 0.0
    %502 = vadd.xlane.f32.xlu0 %v501
    %v503 = vpop.xlane.xlu0 %502
    %v504 = vsel %vm282, %v500, 0.0
    %505 = vadd.xlane.f32.xlu0 %v504
    %v506 = vpop.xlane.xlu0 %505
    %v507 = vrcp.pop %v503
    %v508 = vrcp.pop %v506
    %v509 = vmul.f32 %v498, %v507
    %v510 = vmul.f32 %v500, %v508
    %511 = vrot.lane.b32.xlu0 %v184, 56
    %v512 = vpop.permute.xlu0 %511
    %513 = vrot.lane.b32.xlu0 %v185, 56
    %v514 = vpop.permute.xlu0 %513
    %v518 = vsel %vm282, %v509, 0
    %v521 = vsel %vm282, %v510, 0
    %523 = vmatprep.subr.mxu0 0.0
    %524 = vmatpush1.msra.mxu0 %v512
    %525 = vmatprep.subr.mxu0 0.0
    %526 = vmatpush1.msra.mxu0 %v514
    %527 = vmatprep.subr.mxu0 0.0
    %528 = vmatpush1.msra.mxu0 0.0
    %529 = vmatprep.subr.mxu0 0.0
    %530 = vmatpush1.msra.mxu0 0.0
    %531 = vmatprep.subr.mxu0 0.0
    %532 = vmatpush1.msra.mxu0 0.0
    %533 = vmatprep.subr.mxu0 0.0
    %534 = vmatpush1.msra.mxu0 0.0
    %535 = vmatprep.subr.mxu0 0.0
    %536 = vmatpush1.msra.mxu0 0.0
    %537 = vmatprep.subr.mxu0 0.0
    %538 = vmatpush1.msra.mxu0 0.0
    %539 = vmatprep.subr.mxu0 0.0
    %540 = vmatpush1.msra.mxu0 0.0
    %541 = vmatprep.subr.mxu0 0.0
    %542 = vmatpush1.msra.mxu0 0.0
    %543 = vmatprep.subr.mxu0 0.0
    %544 = vmatpush1.msra.mxu0 0.0
    %545 = vmatprep.subr.mxu0 0.0
    %546 = vmatpush1.msra.mxu0 0.0
    %547 = vmatprep.subr.mxu0 0.0
    %548 = vmatpush1.msra.mxu0 0.0
    %549 = vmatprep.subr.mxu0 0.0
    %550 = vmatpush1.msra.mxu0 0.0
    %551 = vmatprep.subr.mxu0 0.0
    %552 = vmatpush1.msra.mxu0 0.0
    %553 = vmatprep.subr.mxu0 0.0
    %554 = vmatpush1.msra.mxu0 0.0
    %555 = vmatprep.subr.mxu0 0.0
    %556 = vmatpush1.msra.mxu0 0.0
    %557 = vmatprep.subr.mxu0 0.0
    %558 = vmatpush1.msra.mxu0 0.0
    %559 = vmatprep.subr.mxu0 0.0
    %560 = vmatpush1.msra.mxu0 0.0
    %561 = vmatprep.subr.mxu0 0.0
    %562 = vmatpush1.msra.mxu0 0.0
    %563 = vmatprep.subr.mxu0 0.0
    %564 = vmatpush1.msra.mxu0 0.0
    %565 = vmatprep.subr.mxu0 0.0
    %566 = vmatpush1.msra.mxu0 0.0
    %567 = vmatprep.subr.mxu0 0.0
    %568 = vmatpush1.msra.mxu0 0.0
    %569 = vmatprep.subr.mxu0 0.0
    %570 = vmatpush1.msra.mxu0 0.0
    %571 = vmatprep.subr.mxu0 0.0
    %572 = vmatpush1.msra.mxu0 0.0
    %573 = vmatprep.subr.mxu0 0.0
    %574 = vmatpush1.msra.mxu0 0.0
    %575 = vmatprep.subr.mxu0 0.0
    %576 = vmatpush1.msra.mxu0 0.0
    %577 = vmatprep.subr.mxu0 0.0
    %578 = vmatpush1.msra.mxu0 0.0
    %579 = vmatprep.subr.mxu0 0.0
    %580 = vmatpush1.msra.mxu0 0.0
    %581 = vmatprep.subr.mxu0 0.0
    %582 = vmatpush1.msra.mxu0 0.0
    %583 = vmatprep.subr.mxu0 0.0
    %584 = vmatpush1.msra.mxu0 0.0
    %585 = vmatprep.subr.mxu0 0.0
    %586 = vmatpush1.msra.mxu0 0.0
    %587 = vmatprep.mubr.f32.mxu0 0.0
    %588 = vmatmul.mubr.f32.gmra.mrb[0].mxu0 %v518
    %v589 = vpop.f32.mrb[0].mxu0
    %v590 = vadd.f32 0.0, %v589
    %v591 = vpop.f32.mrb[0].mxu0
    %592 = vmatprep.mubr.f32.mxu0 0.0
    %593 = vmatmul.mubr.f32.gmra.mrb[0].mxu0 %v521
    %v594 = vpop.f32.mrb[0].mxu0
    %v595 = vadd.f32 0.0, %v594
    %v596 = vpop.f32.mrb[0].mxu0
    %597 = vdwg.mxu0
    %598 = vrot.lane.b32.xlu0 %v162, 112
    %v599 = vpop.permute.xlu0 %598
    %600 = vrot.lane.b32.xlu0 %v163, 112
    %v601 = vpop.permute.xlu0 %600
    %602 = vrot.lane.b32.xlu0 %v173, 80
    %v603 = vpop.permute.xlu0 %602
    %604 = vrot.lane.b32.xlu0 %v174, 80
    %v605 = vpop.permute.xlu0 %604
    %v606 = vsel %vm192, %v599, 0
    %v608 = vsel %vm192, %v601, 0
    %v610 = vsel %vm192, %v603, 0
    %v612 = vsel %vm192, %v605, 0
    %614 = vmatprep.subr.mxu0 0.0
    %615 = vmatpush1.xpose.msra.mxu0 %v610
    %616 = vmatprep.subr.mxu0 0.0
    %617 = vmatpush1.xpose.msra.mxu0 %v612
    %618 = vmatprep.subr.mxu0 0.0
    %619 = vmatpush1.xpose.msra.mxu0 0.0
    %620 = vmatprep.subr.mxu0 0.0
    %621 = vmatpush1.xpose.msra.mxu0 0.0
    %622 = vmatprep.subr.mxu0 0.0
    %623 = vmatpush1.xpose.msra.mxu0 0.0
    %624 = vmatprep.subr.mxu0 0.0
    %625 = vmatpush1.xpose.msra.mxu0 0.0
    %626 = vmatprep.subr.mxu0 0.0
    %627 = vmatpush1.xpose.msra.mxu0 0.0
    %628 = vmatprep.subr.mxu0 0.0
    %629 = vmatpush1.xpose.msra.mxu0 0.0
    %630 = vmatprep.subr.mxu0 0.0
    %631 = vmatpush1.xpose.msra.mxu0 0.0
    %632 = vmatprep.subr.mxu0 0.0
    %633 = vmatpush1.xpose.msra.mxu0 0.0
    %634 = vmatprep.subr.mxu0 0.0
    %635 = vmatpush1.xpose.msra.mxu0 0.0
    %636 = vmatprep.subr.mxu0 0.0
    %637 = vmatpush1.xpose.msra.mxu0 0.0
    %638 = vmatprep.subr.mxu0 0.0
    %639 = vmatpush1.xpose.msra.mxu0 0.0
    %640 = vmatprep.subr.mxu0 0.0
    %641 = vmatpush1.xpose.msra.mxu0 0.0
    %642 = vmatprep.subr.mxu0 0.0
    %643 = vmatpush1.xpose.msra.mxu0 0.0
    %644 = vmatprep.subr.mxu0 0.0
    %645 = vmatpush1.xpose.msra.mxu0 0.0
    %646 = vmatprep.subr.mxu0 0.0
    %647 = vmatpush1.xpose.msra.mxu0 0.0
    %648 = vmatprep.subr.mxu0 0.0
    %649 = vmatpush1.xpose.msra.mxu0 0.0
    %650 = vmatprep.subr.mxu0 0.0
    %651 = vmatpush1.xpose.msra.mxu0 0.0
    %652 = vmatprep.subr.mxu0 0.0
    %653 = vmatpush1.xpose.msra.mxu0 0.0
    %654 = vmatprep.subr.mxu0 0.0
    %655 = vmatpush1.xpose.msra.mxu0 0.0
    %656 = vmatprep.subr.mxu0 0.0
    %657 = vmatpush1.xpose.msra.mxu0 0.0
    %658 = vmatprep.subr.mxu0 0.0
    %659 = vmatpush1.xpose.msra.mxu0 0.0
    %660 = vmatprep.subr.mxu0 0.0
    %661 = vmatpush1.xpose.msra.mxu0 0.0
    %662 = vmatprep.subr.mxu0 0.0
    %663 = vmatpush1.xpose.msra.mxu0 0.0
    %664 = vmatprep.subr.mxu0 0.0
    %665 = vmatpush1.xpose.msra.mxu0 0.0
    %666 = vmatprep.subr.mxu0 0.0
    %667 = vmatpush1.xpose.msra.mxu0 0.0
    %668 = vmatprep.subr.mxu0 0.0
    %669 = vmatpush1.xpose.msra.mxu0 0.0
    %670 = vmatprep.subr.mxu0 0.0
    %671 = vmatpush1.xpose.msra.mxu0 0.0
    %672 = vmatprep.subr.mxu0 0.0
    %673 = vmatpush1.xpose.msra.mxu0 0.0
    %674 = vmatprep.subr.mxu0 0.0
    %675 = vmatpush1.xpose.msra.mxu0 0.0
    %676 = vmatprep.subr.mxu0 0.0
    %677 = vmatpush1.xpose.msra.mxu0 0.0
    %678 = vmatprep.mubr.f32.mxu0 0.0
    %679 = vmatmul.mubr.f32.gmra.mrb[0].mxu0 %v606
    %v680 = vpop.f32.mrb[0].mxu0
    %v681 = vadd.f32 0.0, %v680
    %v682 = vpop.f32.mrb[0].mxu0
    %683 = vmatprep.mubr.f32.mxu0 0.0
    %684 = vmatmul.mubr.f32.gmra.mrb[0].mxu0 %v608
    %v685 = vpop.f32.mrb[0].mxu0
    %v686 = vadd.f32 0.0, %v685
    %v687 = vpop.f32.mrb[0].mxu0
    %688 = vdwg.mxu0
    %v689 = vmul.f32 %v681, 0.35355338
    %v690 = vmul.f32 %v686, 0.35355338
    %v691 = vadd.f32 %v689, %v22
    %v692 = vadd.f32 %v690, %v23
    %v693 = vsel %vm282, %v691, -inf
    %694 = vmax.xlane.f32.xlu0 %v693
    %v695 = vpop.xlane.xlu0 %694
    %v696 = vsel %vm282, %v692, -inf
    %697 = vmax.xlane.f32.xlu0 %v696
    %v698 = vpop.xlane.xlu0 %697
    %v699 = vsub.f32 %v691, %v695
    %v700 = vsub.f32 %v692, %v698
    %v701 = vmul.f32 %v699, 1.442695
    %v702 = vpow.pop %v701
    %v703 = vmul.f32 %v700, 1.442695
    %v704 = vpow.pop %v703
    %v705 = vsel %vm282, %v702, 0.0
    %706 = vadd.xlane.f32.xlu0 %v705
    %v707 = vpop.xlane.xlu0 %706
    %v708 = vsel %vm282, %v704, 0.0
    %709 = vadd.xlane.f32.xlu0 %v708
    %v710 = vpop.xlane.xlu0 %709
    %v711 = vrcp.pop %v707
    %v712 = vrcp.pop %v710
    %v713 = vmul.f32 %v702, %v711
    %v714 = vmul.f32 %v704, %v712
    %715 = vrot.lane.b32.xlu0 %v184, 48
    %v716 = vpop.permute.xlu0 %715
    %717 = vrot.lane.b32.xlu0 %v185, 48
    %v718 = vpop.permute.xlu0 %717
    %v722 = vsel %vm282, %v713, 0
    %v725 = vsel %vm282, %v714, 0
    %727 = vmatprep.subr.mxu0 0.0
    %728 = vmatpush1.msra.mxu0 %v716
    %729 = vmatprep.subr.mxu0 0.0
    %730 = vmatpush1.msra.mxu0 %v718
    %731 = vmatprep.subr.mxu0 0.0
    %732 = vmatpush1.msra.mxu0 0.0
    %733 = vmatprep.subr.mxu0 0.0
    %734 = vmatpush1.msra.mxu0 0.0
    %735 = vmatprep.subr.mxu0 0.0
    %736 = vmatpush1.msra.mxu0 0.0
    %737 = vmatprep.subr.mxu0 0.0
    %738 = vmatpush1.msra.mxu0 0.0
    %739 = vmatprep.subr.mxu0 0.0
    %740 = vmatpush1.msra.mxu0 0.0
    %741 = vmatprep.subr.mxu0 0.0
    %742 = vmatpush1.msra.mxu0 0.0
    %743 = vmatprep.subr.mxu0 0.0
    %744 = vmatpush1.msra.mxu0 0.0
    %745 = vmatprep.subr.mxu0 0.0
    %746 = vmatpush1.msra.mxu0 0.0
    %747 = vmatprep.subr.mxu0 0.0
    %748 = vmatpush1.msra.mxu0 0.0
    %749 = vmatprep.subr.mxu0 0.0
    %750 = vmatpush1.msra.mxu0 0.0
    %751 = vmatprep.subr.mxu0 0.0
    %752 = vmatpush1.msra.mxu0 0.0
    %753 = vmatprep.subr.mxu0 0.0
    %754 = vmatpush1.msra.mxu0 0.0
    %755 = vmatprep.subr.mxu0 0.0
    %756 = vmatpush1.msra.mxu0 0.0
    %757 = vmatprep.subr.mxu0 0.0
    %758 = vmatpush1.msra.mxu0 0.0
    %759 = vmatprep.subr.mxu0 0.0
    %760 = vmatpush1.msra.mxu0 0.0
    %761 = vmatprep.subr.mxu0 0.0
    %762 = vmatpush1.msra.mxu0 0.0
    %763 = vmatprep.subr.mxu0 0.0
    %764 = vmatpush1.msra.mxu0 0.0
    %765 = vmatprep.subr.mxu0 0.0
    %766 = vmatpush1.msra.mxu0 0.0
    %767 = vmatprep.subr.mxu0 0.0
    %768 = vmatpush1.msra.mxu0 0.0
    %769 = vmatprep.subr.mxu0 0.0
    %770 = vmatpush1.msra.mxu0 0.0
    %771 = vmatprep.subr.mxu0 0.0
    %772 = vmatpush1.msra.mxu0 0.0
    %773 = vmatprep.subr.mxu0 0.0
    %774 = vmatpush1.msra.mxu0 0.0
    %775 = vmatprep.subr.mxu0 0.0
    %776 = vmatpush1.msra.mxu0 0.0
    %777 = vmatprep.subr.mxu0 0.0
    %778 = vmatpush1.msra.mxu0 0.0
    %779 = vmatprep.subr.mxu0 0.0
    %780 = vmatpush1.msra.mxu0 0.0
    %781 = vmatprep.subr.mxu0 0.0
    %782 = vmatpush1.msra.mxu0 0.0
    %783 = vmatprep.subr.mxu0 0.0
    %784 = vmatpush1.msra.mxu0 0.0
    %785 = vmatprep.subr.mxu0 0.0
    %786 = vmatpush1.msra.mxu0 0.0
    %787 = vmatprep.subr.mxu0 0.0
    %788 = vmatpush1.msra.mxu0 0.0
    %789 = vmatprep.subr.mxu0 0.0
    %790 = vmatpush1.msra.mxu0 0.0
    %791 = vmatprep.mubr.f32.mxu0 0.0
    %792 = vmatmul.mubr.f32.gmra.mrb[0].mxu0 %v722
    %v793 = vpop.f32.mrb[0].mxu0
    %v794 = vadd.f32 0.0, %v793
    %v795 = vpop.f32.mrb[0].mxu0
    %796 = vmatprep.mubr.f32.mxu0 0.0
    %797 = vmatmul.mubr.f32.gmra.mrb[0].mxu0 %v725
    %v798 = vpop.f32.mrb[0].mxu0
    %v799 = vadd.f32 0.0, %v798
    %v800 = vpop.f32.mrb[0].mxu0
    %801 = vdwg.mxu0
    %802 = vrot.lane.b32.xlu0 %v162, 104
    %v803 = vpop.permute.xlu0 %802
    %804 = vrot.lane.b32.xlu0 %v163, 104
    %v805 = vpop.permute.xlu0 %804
    %806 = vrot.lane.b32.xlu0 %v173, 72
    %v807 = vpop.permute.xlu0 %806
    %808 = vrot.lane.b32.xlu0 %v174, 72
    %v809 = vpop.permute.xlu0 %808
    %v810 = vsel %vm192, %v803, 0
    %v812 = vsel %vm192, %v805, 0
    %v814 = vsel %vm192, %v807, 0
    %v816 = vsel %vm192, %v809, 0
    %818 = vmatprep.subr.mxu0 0.0
    %819 = vmatpush1.xpose.msra.mxu0 %v814
    %820 = vmatprep.subr.mxu0 0.0
    %821 = vmatpush1.xpose.msra.mxu0 %v816
    %822 = vmatprep.subr.mxu0 0.0
    %823 = vmatpush1.xpose.msra.mxu0 0.0
    %824 = vmatprep.subr.mxu0 0.0
    %825 = vmatpush1.xpose.msra.mxu0 0.0
    %826 = vmatprep.subr.mxu0 0.0
    %827 = vmatpush1.xpose.msra.mxu0 0.0
    %828 = vmatprep.subr.mxu0 0.0
    %829 = vmatpush1.xpose.msra.mxu0 0.0
    %830 = vmatprep.subr.mxu0 0.0
    %831 = vmatpush1.xpose.msra.mxu0 0.0
    %832 = vmatprep.subr.mxu0 0.0
    %833 = vmatpush1.xpose.msra.mxu0 0.0
    %834 = vmatprep.subr.mxu0 0.0
    %835 = vmatpush1.xpose.msra.mxu0 0.0
    %836 = vmatprep.subr.mxu0 0.0
    %837 = vmatpush1.xpose.msra.mxu0 0.0
    %838 = vmatprep.subr.mxu0 0.0
    %839 = vmatpush1.xpose.msra.mxu0 0.0
    %840 = vmatprep.subr.mxu0 0.0
    %841 = vmatpush1.xpose.msra.mxu0 0.0
    %842 = vmatprep.subr.mxu0 0.0
    %843 = vmatpush1.xpose.msra.mxu0 0.0
    %844 = vmatprep.subr.mxu0 0.0
    %845 = vmatpush1.xpose.msra.mxu0 0.0
    %846 = vmatprep.subr.mxu0 0.0
    %847 = vmatpush1.xpose.msra.mxu0 0.0
    %848 = vmatprep.subr.mxu0 0.0
    %849 = vmatpush1.xpose.msra.mxu0 0.0
    %850 = vmatprep.subr.mxu0 0.0
    %851 = vmatpush1.xpose.msra.mxu0 0.0
    %852 = vmatprep.subr.mxu0 0.0
    %853 = vmatpush1.xpose.msra.mxu0 0.0
    %854 = vmatprep.subr.mxu0 0.0
    %855 = vmatpush1.xpose.msra.mxu0 0.0
    %856 = vmatprep.subr.mxu0 0.0
    %857 = vmatpush1.xpose.msra.mxu0 0.0
    %858 = vmatprep.subr.mxu0 0.0
    %859 = vmatpush1.xpose.msra.mxu0 0.0
    %860 = vmatprep.subr.mxu0 0.0
    %861 = vmatpush1.xpose.msra.mxu0 0.0
    %862 = vmatprep.subr.mxu0 0.0
    %863 = vmatpush1.xpose.msra.mxu0 0.0
    %864 = vmatprep.subr.mxu0 0.0
    %865 = vmatpush1.xpose.msra.mxu0 0.0
    %866 = vmatprep.subr.mxu0 0.0
    %867 = vmatpush1.xpose.msra.mxu0 0.0
    %868 = vmatprep.subr.mxu0 0.0
    %869 = vmatpush1.xpose.msra.mxu0 0.0
    %870 = vmatprep.subr.mxu0 0.0
    %871 = vmatpush1.xpose.msra.mxu0 0.0
    %872 = vmatprep.subr.mxu0 0.0
    %873 = vmatpush1.xpose.msra.mxu0 0.0
    %874 = vmatprep.subr.mxu0 0.0
    %875 = vmatpush1.xpose.msra.mxu0 0.0
    %876 = vmatprep.subr.mxu0 0.0
    %877 = vmatpush1.xpose.msra.mxu0 0.0
    %878 = vmatprep.subr.mxu0 0.0
    %879 = vmatpush1.xpose.msra.mxu0 0.0
    %880 = vmatprep.subr.mxu0 0.0
    %881 = vmatpush1.xpose.msra.mxu0 0.0
    %882 = vmatprep.mubr.f32.mxu0 0.0
    %883 = vmatmul.mubr.f32.gmra.mrb[0].mxu0 %v810
    %v884 = vpop.f32.mrb[0].mxu0
    %v885 = vadd.f32 0.0, %v884
    %v886 = vpop.f32.mrb[0].mxu0
    %887 = vmatprep.mubr.f32.mxu0 0.0
    %888 = vmatmul.mubr.f32.gmra.mrb[0].mxu0 %v812
    %v889 = vpop.f32.mrb[0].mxu0
    %v890 = vadd.f32 0.0, %v889
    %v891 = vpop.f32.mrb[0].mxu0
    %892 = vdwg.mxu0
    %v893 = vmul.f32 %v885, 0.35355338
    %v894 = vmul.f32 %v890, 0.35355338
    %v895 = vadd.f32 %v893, %v22
    %v896 = vadd.f32 %v894, %v23
    %v897 = vsel %vm282, %v895, -inf
    %898 = vmax.xlane.f32.xlu0 %v897
    %v899 = vpop.xlane.xlu0 %898
    %v900 = vsel %vm282, %v896, -inf
    %901 = vmax.xlane.f32.xlu0 %v900
    %v902 = vpop.xlane.xlu0 %901
    %v903 = vsub.f32 %v895, %v899
    %v904 = vsub.f32 %v896, %v902
    %v905 = vmul.f32 %v903, 1.442695
    %v906 = vpow.pop %v905
    %v907 = vmul.f32 %v904, 1.442695
    %v908 = vpow.pop %v907
    %v909 = vsel %vm282, %v906, 0.0
    %910 = vadd.xlane.f32.xlu0 %v909
    %v911 = vpop.xlane.xlu0 %910
    %v912 = vsel %vm282, %v908, 0.0
    %913 = vadd.xlane.f32.xlu0 %v912
    %v914 = vpop.xlane.xlu0 %913
    %v915 = vrcp.pop %v911
    %v916 = vrcp.pop %v914
    %v917 = vmul.f32 %v906, %v915
    %v918 = vmul.f32 %v908, %v916
    %919 = vrot.lane.b32.xlu0 %v184, 40
    %v920 = vpop.permute.xlu0 %919
    %921 = vrot.lane.b32.xlu0 %v185, 40
    %v922 = vpop.permute.xlu0 %921
    %v926 = vsel %vm282, %v917, 0
    %v929 = vsel %vm282, %v918, 0
    %931 = vmatprep.subr.mxu0 0.0
    %932 = vmatpush1.msra.mxu0 %v920
    %933 = vmatprep.subr.mxu0 0.0
    %934 = vmatpush1.msra.mxu0 %v922
    %935 = vmatprep.subr.mxu0 0.0
    %936 = vmatpush1.msra.mxu0 0.0
    %937 = vmatprep.subr.mxu0 0.0
    %938 = vmatpush1.msra.mxu0 0.0
    %939 = vmatprep.subr.mxu0 0.0
    %940 = vmatpush1.msra.mxu0 0.0
    %941 = vmatprep.subr.mxu0 0.0
    %942 = vmatpush1.msra.mxu0 0.0
    %943 = vmatprep.subr.mxu0 0.0
    %944 = vmatpush1.msra.mxu0 0.0
    %945 = vmatprep.subr.mxu0 0.0
    %946 = vmatpush1.msra.mxu0 0.0
    %947 = vmatprep.subr.mxu0 0.0
    %948 = vmatpush1.msra.mxu0 0.0
    %949 = vmatprep.subr.mxu0 0.0
    %950 = vmatpush1.msra.mxu0 0.0
    %951 = vmatprep.subr.mxu0 0.0
    %952 = vmatpush1.msra.mxu0 0.0
    %953 = vmatprep.subr.mxu0 0.0
    %954 = vmatpush1.msra.mxu0 0.0
    %955 = vmatprep.subr.mxu0 0.0
    %956 = vmatpush1.msra.mxu0 0.0
    %957 = vmatprep.subr.mxu0 0.0
    %958 = vmatpush1.msra.mxu0 0.0
    %959 = vmatprep.subr.mxu0 0.0
    %960 = vmatpush1.msra.mxu0 0.0
    %961 = vmatprep.subr.mxu0 0.0
    %962 = vmatpush1.msra.mxu0 0.0
    %963 = vmatprep.subr.mxu0 0.0
    %964 = vmatpush1.msra.mxu0 0.0
    %965 = vmatprep.subr.mxu0 0.0
    %966 = vmatpush1.msra.mxu0 0.0
    %967 = vmatprep.subr.mxu0 0.0
    %968 = vmatpush1.msra.mxu0 0.0
    %969 = vmatprep.subr.mxu0 0.0
    %970 = vmatpush1.msra.mxu0 0.0
    %971 = vmatprep.subr.mxu0 0.0
    %972 = vmatpush1.msra.mxu0 0.0
    %973 = vmatprep.subr.mxu0 0.0
    %974 = vmatpush1.msra.mxu0 0.0
    %975 = vmatprep.subr.mxu0 0.0
    %976 = vmatpush1.msra.mxu0 0.0
    %977 = vmatprep.subr.mxu0 0.0
    %978 = vmatpush1.msra.mxu0 0.0
    %979 = vmatprep.subr.mxu0 0.0
    %980 = vmatpush1.msra.mxu0 0.0
    %981 = vmatprep.subr.mxu0 0.0
    %982 = vmatpush1.msra.mxu0 0.0
    %983 = vmatprep.subr.mxu0 0.0
    %984 = vmatpush1.msra.mxu0 0.0
    %985 = vmatprep.subr.mxu0 0.0
    %986 = vmatpush1.msra.mxu0 0.0
    %987 = vmatprep.subr.mxu0 0.0
    %988 = vmatpush1.msra.mxu0 0.0
    %989 = vmatprep.subr.mxu0 0.0
    %990 = vmatpush1.msra.mxu0 0.0
    %991 = vmatprep.subr.mxu0 0.0
    %992 = vmatpush1.msra.mxu0 0.0
    %993 = vmatprep.subr.mxu0 0.0
    %994 = vmatpush1.msra.mxu0 0.0
    %995 = vmatprep.mubr.f32.mxu0 0.0
    %996 = vmatmul.mubr.f32.gmra.mrb[0].mxu0 %v926
    %v997 = vpop.f32.mrb[0].mxu0
    %v998 = vadd.f32 0.0, %v997
    %v999 = vpop.f32.mrb[0].mxu0
    %1000 = vmatprep.mubr.f32.mxu0 0.0
    %1001 = vmatmul.mubr.f32.gmra.mrb[0].mxu0 %v929
    %v1002 = vpop.f32.mrb[0].mxu0
    %v1003 = vadd.f32 0.0, %v1002
    %v1004 = vpop.f32.mrb[0].mxu0
    %1005 = vdwg.mxu0
    %1008 = vrot.lane.b32.xlu0 %v590, 8
    %v1009 = vpop.permute.xlu0 %1008
    %1010 = vrot.lane.b32.xlu0 %v595, 8
    %v1011 = vpop.permute.xlu0 %1010
    %1016 = vrot.lane.b32.xlu0 %v794, 16
    %v1017 = vpop.permute.xlu0 %1016
    %1018 = vrot.lane.b32.xlu0 %v799, 16
    %v1019 = vpop.permute.xlu0 %1018
    %1024 = vrot.lane.b32.xlu0 %v998, 24
    %v1025 = vpop.permute.xlu0 %1024
    %1026 = vrot.lane.b32.xlu0 %v1003, 24
    %v1027 = vpop.permute.xlu0 %1026
    %v1030 = vsel %vm192, %v386, %v1009
    %v1031 = vsel %vm192, %v391, %v1011
    %v1032 = vsel %vm282, %v1030, %v1017
    %v1033 = vsel %vm282, %v1031, %v1019
    %vm1034 = vcmask 195584
    %v1035 = vsel %vm1034, %v1032, %v1025
    %v1036 = vsel %vm1034, %v1033, %v1027
    %v1037 = vld [vmem:[%s2 + $0xc0] sm:$0xff]
    %v1038 = vld [vmem:[%s2 + $0xc8] sm:$0xff]
    %v1039 = vld [vmem:[%s2 + $0xd0] sm:$0xff]
    %v1040 = vld [vmem:[%s2 + $0xd8] sm:$0xff]
    %v1042 = vsel %vm28, %v1035, 0
    %v1045 = vsel %vm28, %v1036, 0
    %1047 = vmatprep.subr.mxu0 0.0
    %1048 = vmatpush1.msra.mxu0 %v1037
    %1049 = vmatprep.subr.mxu0 0.0
    %1050 = vmatpush1.msra.mxu0 %v1038
    %1051 = vmatprep.subr.mxu0 0.0
    %1052 = vmatpush1.msra.mxu0 %v1039
    %1053 = vmatprep.subr.mxu0 0.0
    %1054 = vmatpush1.msra.mxu0 %v1040
    %1055 = vmatprep.subr.mxu0 0.0
    %1056 = vmatpush1.msra.mxu0 0.0
    %1057 = vmatprep.subr.mxu0 0.0
    %1058 = vmatpush1.msra.mxu0 0.0
    %1059 = vmatprep.subr.mxu0 0.0
    %1060 = vmatpush1.msra.mxu0 0.0
    %1061 = vmatprep.subr.mxu0 0.0
    %1062 = vmatpush1.msra.mxu0 0.0
    %1063 = vmatprep.subr.mxu0 0.0
    %1064 = vmatpush1.msra.mxu0 0.0
    %1065 = vmatprep.subr.mxu0 0.0
    %1066 = vmatpush1.msra.mxu0 0.0
    %1067 = vmatprep.subr.mxu0 0.0
    %1068 = vmatpush1.msra.mxu0 0.0
    %1069 = vmatprep.subr.mxu0 0.0
    %1070 = vmatpush1.msra.mxu0 0.0
    %1071 = vmatprep.subr.mxu0 0.0
    %1072 = vmatpush1.msra.mxu0 0.0
    %1073 = vmatprep.subr.mxu0 0.0
    %1074 = vmatpush1.msra.mxu0 0.0
    %1075 = vmatprep.subr.mxu0 0.0
    %1076 = vmatpush1.msra.mxu0 0.0
    %1077 = vmatprep.subr.mxu0 0.0
    %1078 = vmatpush1.msra.mxu0 0.0
    %1079 = vmatprep.subr.mxu0 0.0
    %1080 = vmatpush1.msra.mxu0 0.0
    %1081 = vmatprep.subr.mxu0 0.0
    %1082 = vmatpush1.msra.mxu0 0.0
    %1083 = vmatprep.subr.mxu0 0.0
    %1084 = vmatpush1.msra.mxu0 0.0
    %1085 = vmatprep.subr.mxu0 0.0
    %1086 = vmatpush1.msra.mxu0 0.0
    %1087 = vmatprep.subr.mxu0 0.0
    %1088 = vmatpush1.msra.mxu0 0.0
    %1089 = vmatprep.subr.mxu0 0.0
    %1090 = vmatpush1.msra.mxu0 0.0
    %1091 = vmatprep.subr.mxu0 0.0
    %1092 = vmatpush1.msra.mxu0 0.0
    %1093 = vmatprep.subr.mxu0 0.0
    %1094 = vmatpush1.msra.mxu0 0.0
    %1095 = vmatprep.subr.mxu0 0.0
    %1096 = vmatpush1.msra.mxu0 0.0
    %1097 = vmatprep.subr.mxu0 0.0
    %1098 = vmatpush1.msra.mxu0 0.0
    %1099 = vmatprep.subr.mxu0 0.0
    %1100 = vmatpush1.msra.mxu0 0.0
    %1101 = vmatprep.subr.mxu0 0.0
    %1102 = vmatpush1.msra.mxu0 0.0
    %1103 = vmatprep.subr.mxu0 0.0
    %1104 = vmatpush1.msra.mxu0 0.0
    %1105 = vmatprep.subr.mxu0 0.0
    %1106 = vmatpush1.msra.mxu0 0.0
    %1107 = vmatprep.subr.mxu0 0.0
    %1108 = vmatpush1.msra.mxu0 0.0
    %1109 = vmatprep.subr.mxu0 0.0
    %1110 = vmatpush1.msra.mxu0 0.0
    %1111 = vmatprep.mubr.f32.mxu0 0.0
    %1112 = vmatmul.mubr.f32.gmra.mrb[0].mxu0 %v1042
    %v1113 = vpop.f32.mrb[0].mxu0
    %v1114 = vadd.f32 0.0, %v1113
    %v1115 = vpop.f32.mrb[0].mxu0
    %1116 = vmatprep.mubr.f32.mxu0 0.0
    %1117 = vmatmul.mubr.f32.gmra.mrb[0].mxu0 %v1045
    %v1118 = vpop.f32.mrb[0].mxu0
    %v1119 = vadd.f32 0.0, %v1118
    %v1120 = vpop.f32.mrb[0].mxu0
    %1121 = vdwg.mxu0
    %v1122 = vadd.f32 %v18, %v1114
    %v1123 = vadd.f32 %v19, %v1119
    %v1124 = vld [vmem:[%s3 + $0x9] sm:$0x1]
    %v1125 = vlaneseq
    %v1126 = vshrl.u32 %v1125, 7
    %v1127 = vsub.s32 0, %v1126
    %v1128 = vrot.slane %v1124, %v1127
    %v1129 = vadd.f32 %v1122, %v1128
    %v1130 = vadd.f32 %v1123, %v1128
    %v1131 = vld [vmem:[%s3 + $0x2] sm:$0x1]
    %v1132 = vld [vmem:[%s3 + $0x3] sm:$0x1]
    %v1133 = vsel %vm28, %v1129, 0.0
    %1134 = vadd.xlane.f32.xlu0 %v1133
    %v1135 = vpop.xlane.xlu0 %1134
    %v1136 = vsel %vm28, %v1130, 0.0
    %1137 = vadd.xlane.f32.xlu0 %v1136
    %v1138 = vpop.xlane.xlu0 %1137
    %v1139 = vmul.f32 %v1135, %v35
    %v1140 = vmul.f32 %v1138, %v35
    %v1141 = vmul.f32 %v1129, %v1129
    %v1142 = vmul.f32 %v1130, %v1130
    %v1143 = vsel %vm28, %v1141, 0.0
    %1144 = vadd.xlane.f32.xlu0 %v1143
    %v1145 = vpop.xlane.xlu0 %1144
    %v1146 = vsel %vm28, %v1142, 0.0
    %1147 = vadd.xlane.f32.xlu0 %v1146
    %v1148 = vpop.xlane.xlu0 %1147
    %v1149 = vmul.f32 %v1145, %v35
    %v1150 = vmul.f32 %v1148, %v35
    %v1151 = vmul.f32 %v1139, %v1139
    %v1152 = vmul.f32 %v1140, %v1140
    %v1153 = vsub.f32 %v1149, %v1151
    %v1154 = vsub.f32 %v1150, %v1152
    %v1155 = vsub.f32 %v1129, %v1139
    %v1156 = vsub.f32 %v1130, %v1140
    %v1157 = vadd.f32 %v1153, 1e-06
    %v1158 = vadd.f32 %v1154, 1e-06
    %v1159 = vrsqrt.pop %v1157
    %v1160 = vrsqrt.pop %v1158
    %v1161 = vmul.f32 %v1155, %v1159
    %v1162 = vmul.f32 %v1156, %v1160
    %v1163 = vlaneseq
    %v1164 = vshrl.u32 %v1163, 7
    %v1165 = vsub.s32 0, %v1164
    %v1166 = vrot.slane %v1131, %v1165
    %v1167 = vmul.f32 %v1161, %v1166
    %v1168 = vmul.f32 %v1162, %v1166
    %v1169 = vlaneseq
    %v1170 = vshrl.u32 %v1169, 7
    %v1171 = vsub.s32 0, %v1170
    %v1172 = vrot.slane %v1132, %v1171
    %v1173 = vadd.f32 %v1167, %v1172
    %v1174 = vadd.f32 %v1168, %v1172
    %v1175 = vld [vmem:[%s2 + $0xa0] sm:$0xff]
    %v1176 = vld [vmem:[%s2 + $0xa8] sm:$0xff]
    %v1177 = vld [vmem:[%s2 + $0xb0] sm:$0xff]
    %v1178 = vld [vmem:[%s2 + $0xb8] sm:$0xff]
    %v1179 = vld [vmem:[%s3 + $0xa] sm:$0x1]
    %v1180 = vlaneseq
    %v1181 = vshrl.u32 %v1180, 7
    %v1182 = vsub.s32 0, %v1181
    %v1183 = vrot.slane %v1179, %v1182
    %v1185 = vsel %vm28, %v1173, 0
    %v1188 = vsel %vm28, %v1174, 0
    %1190 = vmatprep.subr.mxu0 0.0
    %1191 = vmatpush1.msra.mxu0 %v1175
    %1192 = vmatprep.subr.mxu0 0.0
    %1193 = vmatpush1.msra.mxu0 %v1176
    %1194 = vmatprep.subr.mxu0 0.0
    %1195 = vmatpush1.msra.mxu0 %v1177
    %1196 = vmatprep.subr.mxu0 0.0
    %1197 = vmatpush1.msra.mxu0 %v1178
    %1198 = vmatprep.subr.mxu0 0.0
    %1199 = vmatpush1.msra.mxu0 0.0
    %1200 = vmatprep.subr.mxu0 0.0
    %1201 = vmatpush1.msra.mxu0 0.0
    %1202 = vmatprep.subr.mxu0 0.0
    %1203 = vmatpush1.msra.mxu0 0.0
    %1204 = vmatprep.subr.mxu0 0.0
    %1205 = vmatpush1.msra.mxu0 0.0
    %1206 = vmatprep.subr.mxu0 0.0
    %1207 = vmatpush1.msra.mxu0 0.0
    %1208 = vmatprep.subr.mxu0 0.0
    %1209 = vmatpush1.msra.mxu0 0.0
    %1210 = vmatprep.subr.mxu0 0.0
    %1211 = vmatpush1.msra.mxu0 0.0
    %1212 = vmatprep.subr.mxu0 0.0
    %1213 = vmatpush1.msra.mxu0 0.0
    %1214 = vmatprep.subr.mxu0 0.0
    %1215 = vmatpush1.msra.mxu0 0.0
    %1216 = vmatprep.subr.mxu0 0.0
    %1217 = vmatpush1.msra.mxu0 0.0
    %1218 = vmatprep.subr.mxu0 0.0
    %1219 = vmatpush1.msra.mxu0 0.0
    %1220 = vmatprep.subr.mxu0 0.0
    %1221 = vmatpush1.msra.mxu0 0.0
    %1222 = vmatprep.subr.mxu0 0.0
    %1223 = vmatpush1.msra.mxu0 0.0
    %1224 = vmatprep.subr.mxu0 0.0
    %1225 = vmatpush1.msra.mxu0 0.0
    %1226 = vmatprep.subr.mxu0 0.0
    %1227 = vmatpush1.msra.mxu0 0.0
    %1228 = vmatprep.subr.mxu0 0.0
    %1229 = vmatpush1.msra.mxu0 0.0
    %1230 = vmatprep.subr.mxu0 0.0
    %1231 = vmatpush1.msra.mxu0 0.0
    %1232 = vmatprep.subr.mxu0 0.0
    %1233 = vmatpush1.msra.mxu0 0.0
    %1234 = vmatprep.subr.mxu0 0.0
    %1235 = vmatpush1.msra.mxu0 0.0
    %1236 = vmatprep.subr.mxu0 0.0
    %1237 = vmatpush1.msra.mxu0 0.0
    %1238 = vmatprep.subr.mxu0 0.0
    %1239 = vmatpush1.msra.mxu0 0.0
    %1240 = vmatprep.subr.mxu0 0.0
    %1241 = vmatpush1.msra.mxu0 0.0
    %1242 = vmatprep.subr.mxu0 0.0
    %1243 = vmatpush1.msra.mxu0 0.0
    %1244 = vmatprep.subr.mxu0 0.0
    %1245 = vmatpush1.msra.mxu0 0.0
    %1246 = vmatprep.subr.mxu0 0.0
    %1247 = vmatpush1.msra.mxu0 0.0
    %1248 = vmatprep.subr.mxu0 0.0
    %1249 = vmatpush1.msra.mxu0 0.0
    %1250 = vmatprep.subr.mxu0 0.0
    %1251 = vmatpush1.msra.mxu0 0.0
    %1252 = vmatprep.subr.mxu0 0.0
    %1253 = vmatpush1.msra.mxu0 0.0
    %1254 = vmatprep.mubr.f32.mxu0 0.0
    %1255 = vmatmul.mubr.f32.gmra.mrb[0].mxu0 %v1185
    %v1256 = vpop.f32.mrb[0].mxu0
    %v1257 = vadd.f32 %v1183, %v1256
    %v1258 = vpop.f32.mrb[0].mxu0
    %1259 = vmatprep.mubr.f32.mxu0 0.0
    %1260 = vmatmul.mubr.f32.gmra.mrb[0].mxu0 %v1188
    %v1261 = vpop.f32.mrb[0].mxu0
    %v1262 = vadd.f32 %v1183, %v1261
    %v1263 = vpop.f32.mrb[0].mxu0
    %1264 = vdwg.mxu0
    %v1265 = vld [vmem:[%s2 + $0x20] sm:$0xff]
    %v1266 = vld [vmem:[%s2 + $0x28] sm:$0xff]
    %v1267 = vld [vmem:[%s2 + $0x30] sm:$0xff]
    %v1268 = vld [vmem:[%s2 + $0x38] sm:$0xff]
    %v1270 = vsel %vm28, %v20, 0
    %v1273 = vsel %vm28, %v21, 0
    %1275 = vmatprep.subr.mxu0 0.0
    %1276 = vmatpush1.msra.mxu0 %v1265
    %1277 = vmatprep.subr.mxu0 0.0
    %1278 = vmatpush1.msra.mxu0 %v1266
    %1279 = vmatprep.subr.mxu0 0.0
    %1280 = vmatpush1.msra.mxu0 %v1267
    %1281 = vmatprep.subr.mxu0 0.0
    %1282 = vmatpush1.msra.mxu0 %v1268
    %1283 = vmatprep.subr.mxu0 0.0
    %1284 = vmatpush1.msra.mxu0 0.0
    %1285 = vmatprep.subr.mxu0 0.0
    %1286 = vmatpush1.msra.mxu0 0.0
    %1287 = vmatprep.subr.mxu0 0.0
    %1288 = vmatpush1.msra.mxu0 0.0
    %1289 = vmatprep.subr.mxu0 0.0
    %1290 = vmatpush1.msra.mxu0 0.0
    %1291 = vmatprep.subr.mxu0 0.0
    %1292 = vmatpush1.msra.mxu0 0.0
    %1293 = vmatprep.subr.mxu0 0.0
    %1294 = vmatpush1.msra.mxu0 0.0
    %1295 = vmatprep.subr.mxu0 0.0
    %1296 = vmatpush1.msra.mxu0 0.0
    %1297 = vmatprep.subr.mxu0 0.0
    %1298 = vmatpush1.msra.mxu0 0.0
    %1299 = vmatprep.subr.mxu0 0.0
    %1300 = vmatpush1.msra.mxu0 0.0
    %1301 = vmatprep.subr.mxu0 0.0
    %1302 = vmatpush1.msra.mxu0 0.0
    %1303 = vmatprep.subr.mxu0 0.0
    %1304 = vmatpush1.msra.mxu0 0.0
    %1305 = vmatprep.subr.mxu0 0.0
    %1306 = vmatpush1.msra.mxu0 0.0
    %1307 = vmatprep.subr.mxu0 0.0
    %1308 = vmatpush1.msra.mxu0 0.0
    %1309 = vmatprep.subr.mxu0 0.0
    %1310 = vmatpush1.msra.mxu0 0.0
    %1311 = vmatprep.subr.mxu0 0.0
    %1312 = vmatpush1.msra.mxu0 0.0
    %1313 = vmatprep.subr.mxu0 0.0
    %1314 = vmatpush1.msra.mxu0 0.0
    %1315 = vmatprep.subr.mxu0 0.0
    %1316 = vmatpush1.msra.mxu0 0.0
    %1317 = vmatprep.subr.mxu0 0.0
    %1318 = vmatpush1.msra.mxu0 0.0
    %1319 = vmatprep.subr.mxu0 0.0
    %1320 = vmatpush1.msra.mxu0 0.0
    %1321 = vmatprep.subr.mxu0 0.0
    %1322 = vmatpush1.msra.mxu0 0.0
    %1323 = vmatprep.subr.mxu0 0.0
    %1324 = vmatpush1.msra.mxu0 0.0
    %1325 = vmatprep.subr.mxu0 0.0
    %1326 = vmatpush1.msra.mxu0 0.0
    %1327 = vmatprep.subr.mxu0 0.0
    %1328 = vmatpush1.msra.mxu0 0.0
    %1329 = vmatprep.subr.mxu0 0.0
    %1330 = vmatpush1.msra.mxu0 0.0
    %1331 = vmatprep.subr.mxu0 0.0
    %1332 = vmatpush1.msra.mxu0 0.0
    %1333 = vmatprep.subr.mxu0 0.0
    %1334 = vmatpush1.msra.mxu0 0.0
    %1335 = vmatprep.subr.mxu0 0.0
    %1336 = vmatpush1.msra.mxu0 0.0
    %1337 = vmatprep.subr.mxu0 0.0
    %1338 = vmatpush1.msra.mxu0 0.0
    %1339 = vmatprep.mubr.f32.mxu0 0.0
    %1340 = vmatmul.mubr.f32.gmra.mrb[0].mxu0 %v1270
    %v1341 = vpop.f32.mrb[0].mxu0
    %v1342 = vadd.f32 0.0, %v1341
    %v1343 = vpop.f32.mrb[0].mxu0
    %1344 = vmatprep.mubr.f32.mxu0 0.0
    %1345 = vmatmul.mubr.f32.gmra.mrb[0].mxu0 %v1273
    %v1346 = vpop.f32.mrb[0].mxu0
    %v1347 = vadd.f32 0.0, %v1346
    %v1348 = vpop.f32.mrb[0].mxu0
    %1349 = vdwg.mxu0
    %v1350 = vld [vmem:[%s3 + $0xb] sm:$0x1]
    %v1351 = vlaneseq
    %v1352 = vshrl.u32 %v1351, 7
    %v1353 = vsub.s32 0, %v1352
    %v1354 = vrot.slane %v1350, %v1353
    %v1355 = vadd.f32 %v1342, %v1354
    %v1356 = vadd.f32 %v1347, %v1354
    %v1357 = vld [vmem:[%s3 + $0xc] sm:$0x1]
    %v1358 = vlaneseq
    %v1359 = vshrl.u32 %v1358, 7
    %v1360 = vsub.s32 0, %v1359
    %v1361 = vrot.slane %v1357, %v1360
    %1363 = vrot.lane.b32.xlu0 %v1361, 32
    %v1364 = vpop.permute.xlu0 %1363
    %v1366 = vadd.f32 %v1342, %v1364
    %v1367 = vadd.f32 %v1347, %v1364
    %v1369 = vsel %vm192, %v1257, 0
    %v1372 = vsel %vm192, %v1262, 0
    %v1375 = vsel %vm192, %v1355, 0
    %v1378 = vsel %vm192, %v1356, 0
    %1380 = vmatprep.subr.mxu0 0.0
    %1381 = vmatpush1.xpose.msra.mxu0 %v1375
    %1382 = vmatprep.subr.mxu0 0.0
    %1383 = vmatpush1.xpose.msra.mxu0 %v1378
    %1384 = vmatprep.subr.mxu0 0.0
    %1385 = vmatpush1.xpose.msra.mxu0 0.0
    %1386 = vmatprep.subr.mxu0 0.0
    %1387 = vmatpush1.xpose.msra.mxu0 0.0
    %1388 = vmatprep.subr.mxu0 0.0
    %1389 = vmatpush1.xpose.msra.mxu0 0.0
    %1390 = vmatprep.subr.mxu0 0.0
    %1391 = vmatpush1.xpose.msra.mxu0 0.0
    %1392 = vmatprep.subr.mxu0 0.0
    %1393 = vmatpush1.xpose.msra.mxu0 0.0
    %1394 = vmatprep.subr.mxu0 0.0
    %1395 = vmatpush1.xpose.msra.mxu0 0.0
    %1396 = vmatprep.subr.mxu0 0.0
    %1397 = vmatpush1.xpose.msra.mxu0 0.0
    %1398 = vmatprep.subr.mxu0 0.0
    %1399 = vmatpush1.xpose.msra.mxu0 0.0
    %1400 = vmatprep.subr.mxu0 0.0
    %1401 = vmatpush1.xpose.msra.mxu0 0.0
    %1402 = vmatprep.subr.mxu0 0.0
    %1403 = vmatpush1.xpose.msra.mxu0 0.0
    %1404 = vmatprep.subr.mxu0 0.0
    %1405 = vmatpush1.xpose.msra.mxu0 0.0
    %1406 = vmatprep.subr.mxu0 0.0
    %1407 = vmatpush1.xpose.msra.mxu0 0.0
    %1408 = vmatprep.subr.mxu0 0.0
    %1409 = vmatpush1.xpose.msra.mxu0 0.0
    %1410 = vmatprep.subr.mxu0 0.0
    %1411 = vmatpush1.xpose.msra.mxu0 0.0
    %1412 = vmatprep.subr.mxu0 0.0
    %1413 = vmatpush1.xpose.msra.mxu0 0.0
    %1414 = vmatprep.subr.mxu0 0.0
    %1415 = vmatpush1.xpose.msra.mxu0 0.0
    %1416 = vmatprep.subr.mxu0 0.0
    %1417 = vmatpush1.xpose.msra.mxu0 0.0
    %1418 = vmatprep.subr.mxu0 0.0
    %1419 = vmatpush1.xpose.msra.mxu0 0.0
    %1420 = vmatprep.subr.mxu0 0.0
    %1421 = vmatpush1.xpose.msra.mxu0 0.0
    %1422 = vmatprep.subr.mxu0 0.0
    %1423 = vmatpush1.xpose.msra.mxu0 0.0
    %1424 = vmatprep.subr.mxu0 0.0
    %1425 = vmatpush1.xpose.msra.mxu0 0.0
    %1426 = vmatprep.subr.mxu0 0.0
    %1427 = vmatpush1.xpose.msra.mxu0 0.0
    %1428 = vmatprep.subr.mxu0 0.0
    %1429 = vmatpush1.xpose.msra.mxu0 0.0
    %1430 = vmatprep.subr.mxu0 0.0
    %1431 = vmatpush1.xpose.msra.mxu0 0.0
    %1432 = vmatprep.subr.mxu0 0.0
    %1433 = vmatpush1.xpose.msra.mxu0 0.0
    %1434 = vmatprep.subr.mxu0 0.0
    %1435 = vmatpush1.xpose.msra.mxu0 0.0
    %1436 = vmatprep.subr.mxu0 0.0
    %1437 = vmatpush1.xpose.msra.mxu0 0.0
    %1438 = vmatprep.subr.mxu0 0.0
    %1439 = vmatpush1.xpose.msra.mxu0 0.0
    %1440 = vmatprep.subr.mxu0 0.0
    %1441 = vmatpush1.xpose.msra.mxu0 0.0
    %1442 = vmatprep.subr.mxu0 0.0
    %1443 = vmatpush1.xpose.msra.mxu0 0.0
    %1444 = vmatprep.mubr.f32.mxu0 0.0
    %1445 = vmatmul.mubr.f32.gmra.mrb[0].mxu0 %v1369
    %v1446 = vpop.f32.mrb[0].mxu0
    %v1447 = vadd.f32 0.0, %v1446
    %v1448 = vpop.f32.mrb[0].mxu0
    %1449 = vmatprep.mubr.f32.mxu0 0.0
    %1450 = vmatmul.mubr.f32.gmra.mrb[0].mxu0 %v1372
    %v1451 = vpop.f32.mrb[0].mxu0
    %v1452 = vadd.f32 0.0, %v1451
    %v1453 = vpop.f32.mrb[0].mxu0
    %1454 = vdwg.mxu0
    %v1455 = vmul.f32 %v1447, 0.35355338
    %v1456 = vmul.f32 %v1452, 0.35355338
    %v1457 = vadd.f32 %v1455, %v24
    %v1458 = vadd.f32 %v1456, %v25
    %v1459 = vsel %vm282, %v1457, -inf
    %1460 = vmax.xlane.f32.xlu0 %v1459
    %v1461 = vpop.xlane.xlu0 %1460
    %v1462 = vsel %vm282, %v1458, -inf
    %1463 = vmax.xlane.f32.xlu0 %v1462
    %v1464 = vpop.xlane.xlu0 %1463
    %v1465 = vsub.f32 %v1457, %v1461
    %v1466 = vsub.f32 %v1458, %v1464
    %v1467 = vmul.f32 %v1465, 1.442695
    %v1468 = vpow.pop %v1467
    %v1469 = vmul.f32 %v1466, 1.442695
    %v1470 = vpow.pop %v1469
    %v1471 = vsel %vm282, %v1468, 0.0
    %1472 = vadd.xlane.f32.xlu0 %v1471
    %v1473 = vpop.xlane.xlu0 %1472
    %v1474 = vsel %vm282, %v1470, 0.0
    %1475 = vadd.xlane.f32.xlu0 %v1474
    %v1476 = vpop.xlane.xlu0 %1475
    %v1477 = vrcp.pop %v1473
    %v1478 = vrcp.pop %v1476
    %v1479 = vmul.f32 %v1468, %v1477
    %v1480 = vmul.f32 %v1470, %v1478
    %1483 = vrot.lane.b32.xlu0 %v1366, 96
    %v1484 = vpop.permute.xlu0 %1483
    %1485 = vrot.lane.b32.xlu0 %v1367, 96
    %v1486 = vpop.permute.xlu0 %1485
    %v1490 = vsel %vm282, %v1479, 0
    %v1493 = vsel %vm282, %v1480, 0
    %1495 = vmatprep.subr.mxu0 0.0
    %1496 = vmatpush1.msra.mxu0 %v1484
    %1497 = vmatprep.subr.mxu0 0.0
    %1498 = vmatpush1.msra.mxu0 %v1486
    %1499 = vmatprep.subr.mxu0 0.0
    %1500 = vmatpush1.msra.mxu0 0.0
    %1501 = vmatprep.subr.mxu0 0.0
    %1502 = vmatpush1.msra.mxu0 0.0
    %1503 = vmatprep.subr.mxu0 0.0
    %1504 = vmatpush1.msra.mxu0 0.0
    %1505 = vmatprep.subr.mxu0 0.0
    %1506 = vmatpush1.msra.mxu0 0.0
    %1507 = vmatprep.subr.mxu0 0.0
    %1508 = vmatpush1.msra.mxu0 0.0
    %1509 = vmatprep.subr.mxu0 0.0
    %1510 = vmatpush1.msra.mxu0 0.0
    %1511 = vmatprep.subr.mxu0 0.0
    %1512 = vmatpush1.msra.mxu0 0.0
    %1513 = vmatprep.subr.mxu0 0.0
    %1514 = vmatpush1.msra.mxu0 0.0
    %1515 = vmatprep.subr.mxu0 0.0
    %1516 = vmatpush1.msra.mxu0 0.0
    %1517 = vmatprep.subr.mxu0 0.0
    %1518 = vmatpush1.msra.mxu0 0.0
    %1519 = vmatprep.subr.mxu0 0.0
    %1520 = vmatpush1.msra.mxu0 0.0
    %1521 = vmatprep.subr.mxu0 0.0
    %1522 = vmatpush1.msra.mxu0 0.0
    %1523 = vmatprep.subr.mxu0 0.0
    %1524 = vmatpush1.msra.mxu0 0.0
    %1525 = vmatprep.subr.mxu0 0.0
    %1526 = vmatpush1.msra.mxu0 0.0
    %1527 = vmatprep.subr.mxu0 0.0
    %1528 = vmatpush1.msra.mxu0 0.0
    %1529 = vmatprep.subr.mxu0 0.0
    %1530 = vmatpush1.msra.mxu0 0.0
    %1531 = vmatprep.subr.mxu0 0.0
    %1532 = vmatpush1.msra.mxu0 0.0
    %1533 = vmatprep.subr.mxu0 0.0
    %1534 = vmatpush1.msra.mxu0 0.0
    %1535 = vmatprep.subr.mxu0 0.0
    %1536 = vmatpush1.msra.mxu0 0.0
    %1537 = vmatprep.subr.mxu0 0.0
    %1538 = vmatpush1.msra.mxu0 0.0
    %1539 = vmatprep.subr.mxu0 0.0
    %1540 = vmatpush1.msra.mxu0 0.0
    %1541 = vmatprep.subr.mxu0 0.0
    %1542 = vmatpush1.msra.mxu0 0.0
    %1543 = vmatprep.subr.mxu0 0.0
    %1544 = vmatpush1.msra.mxu0 0.0
    %1545 = vmatprep.subr.mxu0 0.0
    %1546 = vmatpush1.msra.mxu0 0.0
    %1547 = vmatprep.subr.mxu0 0.0
    %1548 = vmatpush1.msra.mxu0 0.0
    %1549 = vmatprep.subr.mxu0 0.0
    %1550 = vmatpush1.msra.mxu0 0.0
    %1551 = vmatprep.subr.mxu0 0.0
    %1552 = vmatpush1.msra.mxu0 0.0
    %1553 = vmatprep.subr.mxu0 0.0
    %1554 = vmatpush1.msra.mxu0 0.0
    %1555 = vmatprep.subr.mxu0 0.0
    %1556 = vmatpush1.msra.mxu0 0.0
    %1557 = vmatprep.subr.mxu0 0.0
    %1558 = vmatpush1.msra.mxu0 0.0
    %1559 = vmatprep.mubr.f32.mxu0 0.0
    %1560 = vmatmul.mubr.f32.gmra.mrb[0].mxu0 %v1490
    %v1561 = vpop.f32.mrb[0].mxu0
    %v1562 = vadd.f32 0.0, %v1561
    %v1563 = vpop.f32.mrb[0].mxu0
    %1564 = vmatprep.mubr.f32.mxu0 0.0
    %1565 = vmatmul.mubr.f32.gmra.mrb[0].mxu0 %v1493
    %v1566 = vpop.f32.mrb[0].mxu0
    %v1567 = vadd.f32 0.0, %v1566
    %v1568 = vpop.f32.mrb[0].mxu0
    %1569 = vdwg.mxu0
    %1570 = vrot.lane.b32.xlu0 %v1257, 120
    %v1571 = vpop.permute.xlu0 %1570
    %1572 = vrot.lane.b32.xlu0 %v1262, 120
    %v1573 = vpop.permute.xlu0 %1572
    %1574 = vrot.lane.b32.xlu0 %v1355, 120
    %v1575 = vpop.permute.xlu0 %1574
    %1576 = vrot.lane.b32.xlu0 %v1356, 120
    %v1577 = vpop.permute.xlu0 %1576
    %v1578 = vsel %vm192, %v1571, 0
    %v1580 = vsel %vm192, %v1573, 0
    %v1582 = vsel %vm192, %v1575, 0
    %v1584 = vsel %vm192, %v1577, 0
    %1586 = vmatprep.subr.mxu0 0.0
    %1587 = vmatpush1.xpose.msra.mxu0 %v1582
    %1588 = vmatprep.subr.mxu0 0.0
    %1589 = vmatpush1.xpose.msra.mxu0 %v1584
    %1590 = vmatprep.subr.mxu0 0.0
    %1591 = vmatpush1.xpose.msra.mxu0 0.0
    %1592 = vmatprep.subr.mxu0 0.0
    %1593 = vmatpush1.xpose.msra.mxu0 0.0
    %1594 = vmatprep.subr.mxu0 0.0
    %1595 = vmatpush1.xpose.msra.mxu0 0.0
    %1596 = vmatprep.subr.mxu0 0.0
    %1597 = vmatpush1.xpose.msra.mxu0 0.0
    %1598 = vmatprep.subr.mxu0 0.0
    %1599 = vmatpush1.xpose.msra.mxu0 0.0
    %1600 = vmatprep.subr.mxu0 0.0
    %1601 = vmatpush1.xpose.msra.mxu0 0.0
    %1602 = vmatprep.subr.mxu0 0.0
    %1603 = vmatpush1.xpose.msra.mxu0 0.0
    %1604 = vmatprep.subr.mxu0 0.0
    %1605 = vmatpush1.xpose.msra.mxu0 0.0
    %1606 = vmatprep.subr.mxu0 0.0
    %1607 = vmatpush1.xpose.msra.mxu0 0.0
    %1608 = vmatprep.subr.mxu0 0.0
    %1609 = vmatpush1.xpose.msra.mxu0 0.0
    %1610 = vmatprep.subr.mxu0 0.0
    %1611 = vmatpush1.xpose.msra.mxu0 0.0
    %1612 = vmatprep.subr.mxu0 0.0
    %1613 = vmatpush1.xpose.msra.mxu0 0.0
    %1614 = vmatprep.subr.mxu0 0.0
    %1615 = vmatpush1.xpose.msra.mxu0 0.0
    %1616 = vmatprep.subr.mxu0 0.0
    %1617 = vmatpush1.xpose.msra.mxu0 0.0
    %1618 = vmatprep.subr.mxu0 0.0
    %1619 = vmatpush1.xpose.msra.mxu0 0.0
    %1620 = vmatprep.subr.mxu0 0.0
    %1621 = vmatpush1.xpose.msra.mxu0 0.0
    %1622 = vmatprep.subr.mxu0 0.0
    %1623 = vmatpush1.xpose.msra.mxu0 0.0
    %1624 = vmatprep.subr.mxu0 0.0
    %1625 = vmatpush1.xpose.msra.mxu0 0.0
    %1626 = vmatprep.subr.mxu0 0.0
    %1627 = vmatpush1.xpose.msra.mxu0 0.0
    %1628 = vmatprep.subr.mxu0 0.0
    %1629 = vmatpush1.xpose.msra.mxu0 0.0
    %1630 = vmatprep.subr.mxu0 0.0
    %1631 = vmatpush1.xpose.msra.mxu0 0.0
    %1632 = vmatprep.subr.mxu0 0.0
    %1633 = vmatpush1.xpose.msra.mxu0 0.0
    %1634 = vmatprep.subr.mxu0 0.0
    %1635 = vmatpush1.xpose.msra.mxu0 0.0
    %1636 = vmatprep.subr.mxu0 0.0
    %1637 = vmatpush1.xpose.msra.mxu0 0.0
    %1638 = vmatprep.subr.mxu0 0.0
    %1639 = vmatpush1.xpose.msra.mxu0 0.0
    %1640 = vmatprep.subr.mxu0 0.0
    %1641 = vmatpush1.xpose.msra.mxu0 0.0
    %1642 = vmatprep.subr.mxu0 0.0
    %1643 = vmatpush1.xpose.msra.mxu0 0.0
    %1644 = vmatprep.subr.mxu0 0.0
    %1645 = vmatpush1.xpose.msra.mxu0 0.0
    %1646 = vmatprep.subr.mxu0 0.0
    %1647 = vmatpush1.xpose.msra.mxu0 0.0
    %1648 = vmatprep.subr.mxu0 0.0
    %1649 = vmatpush1.xpose.msra.mxu0 0.0
    %1650 = vmatprep.mubr.f32.mxu0 0.0
    %1651 = vmatmul.mubr.f32.gmra.mrb[0].mxu0 %v1578
    %v1652 = vpop.f32.mrb[0].mxu0
    %v1653 = vadd.f32 0.0, %v1652
    %v1654 = vpop.f32.mrb[0].mxu0
    %1655 = vmatprep.mubr.f32.mxu0 0.0
    %1656 = vmatmul.mubr.f32.gmra.mrb[0].mxu0 %v1580
    %v1657 = vpop.f32.mrb[0].mxu0
    %v1658 = vadd.f32 0.0, %v1657
    %v1659 = vpop.f32.mrb[0].mxu0
    %1660 = vdwg.mxu0
    %v1661 = vmul.f32 %v1653, 0.35355338
    %v1662 = vmul.f32 %v1658, 0.35355338
    %v1663 = vadd.f32 %v1661, %v24
    %v1664 = vadd.f32 %v1662, %v25
    %v1665 = vsel %vm282, %v1663, -inf
    %1666 = vmax.xlane.f32.xlu0 %v1665
    %v1667 = vpop.xlane.xlu0 %1666
    %v1668 = vsel %vm282, %v1664, -inf
    %1669 = vmax.xlane.f32.xlu0 %v1668
    %v1670 = vpop.xlane.xlu0 %1669
    %v1671 = vsub.f32 %v1663, %v1667
    %v1672 = vsub.f32 %v1664, %v1670
    %v1673 = vmul.f32 %v1671, 1.442695
    %v1674 = vpow.pop %v1673
    %v1675 = vmul.f32 %v1672, 1.442695
    %v1676 = vpow.pop %v1675
    %v1677 = vsel %vm282, %v1674, 0.0
    %1678 = vadd.xlane.f32.xlu0 %v1677
    %v1679 = vpop.xlane.xlu0 %1678
    %v1680 = vsel %vm282, %v1676, 0.0
    %1681 = vadd.xlane.f32.xlu0 %v1680
    %v1682 = vpop.xlane.xlu0 %1681
    %v1683 = vrcp.pop %v1679
    %v1684 = vrcp.pop %v1682
    %v1685 = vmul.f32 %v1674, %v1683
    %v1686 = vmul.f32 %v1676, %v1684
    %1687 = vrot.lane.b32.xlu0 %v1366, 88
    %v1688 = vpop.permute.xlu0 %1687
    %1689 = vrot.lane.b32.xlu0 %v1367, 88
    %v1690 = vpop.permute.xlu0 %1689
    %v1694 = vsel %vm282, %v1685, 0
    %v1697 = vsel %vm282, %v1686, 0
    %1699 = vmatprep.subr.mxu0 0.0
    %1700 = vmatpush1.msra.mxu0 %v1688
    %1701 = vmatprep.subr.mxu0 0.0
    %1702 = vmatpush1.msra.mxu0 %v1690
    %1703 = vmatprep.subr.mxu0 0.0
    %1704 = vmatpush1.msra.mxu0 0.0
    %1705 = vmatprep.subr.mxu0 0.0
    %1706 = vmatpush1.msra.mxu0 0.0
    %1707 = vmatprep.subr.mxu0 0.0
    %1708 = vmatpush1.msra.mxu0 0.0
    %1709 = vmatprep.subr.mxu0 0.0
    %1710 = vmatpush1.msra.mxu0 0.0
    %1711 = vmatprep.subr.mxu0 0.0
    %1712 = vmatpush1.msra.mxu0 0.0
    %1713 = vmatprep.subr.mxu0 0.0
    %1714 = vmatpush1.msra.mxu0 0.0
    %1715 = vmatprep.subr.mxu0 0.0
    %1716 = vmatpush1.msra.mxu0 0.0
    %1717 = vmatprep.subr.mxu0 0.0
    %1718 = vmatpush1.msra.mxu0 0.0
    %1719 = vmatprep.subr.mxu0 0.0
    %1720 = vmatpush1.msra.mxu0 0.0
    %1721 = vmatprep.subr.mxu0 0.0
    %1722 = vmatpush1.msra.mxu0 0.0
    %1723 = vmatprep.subr.mxu0 0.0
    %1724 = vmatpush1.msra.mxu0 0.0
    %1725 = vmatprep.subr.mxu0 0.0
    %1726 = vmatpush1.msra.mxu0 0.0
    %1727 = vmatprep.subr.mxu0 0.0
    %1728 = vmatpush1.msra.mxu0 0.0
    %1729 = vmatprep.subr.mxu0 0.0
    %1730 = vmatpush1.msra.mxu0 0.0
    %1731 = vmatprep.subr.mxu0 0.0
    %1732 = vmatpush1.msra.mxu0 0.0
    %1733 = vmatprep.subr.mxu0 0.0
    %1734 = vmatpush1.msra.mxu0 0.0
    %1735 = vmatprep.subr.mxu0 0.0
    %1736 = vmatpush1.msra.mxu0 0.0
    %1737 = vmatprep.subr.mxu0 0.0
    %1738 = vmatpush1.msra.mxu0 0.0
    %1739 = vmatprep.subr.mxu0 0.0
    %1740 = vmatpush1.msra.mxu0 0.0
    %1741 = vmatprep.subr.mxu0 0.0
    %1742 = vmatpush1.msra.mxu0 0.0
    %1743 = vmatprep.subr.mxu0 0.0
    %1744 = vmatpush1.msra.mxu0 0.0
    %1745 = vmatprep.subr.mxu0 0.0
    %1746 = vmatpush1.msra.mxu0 0.0
    %1747 = vmatprep.subr.mxu0 0.0
    %1748 = vmatpush1.msra.mxu0 0.0
    %1749 = vmatprep.subr.mxu0 0.0
    %1750 = vmatpush1.msra.mxu0 0.0
    %1751 = vmatprep.subr.mxu0 0.0
    %1752 = vmatpush1.msra.mxu0 0.0
    %1753 = vmatprep.subr.mxu0 0.0
    %1754 = vmatpush1.msra.mxu0 0.0
    %1755 = vmatprep.subr.mxu0 0.0
    %1756 = vmatpush1.msra.mxu0 0.0
    %1757 = vmatprep.subr.mxu0 0.0
    %1758 = vmatpush1.msra.mxu0 0.0
    %1759 = vmatprep.subr.mxu0 0.0
    %1760 = vmatpush1.msra.mxu0 0.0
    %1761 = vmatprep.subr.mxu0 0.0
    %1762 = vmatpush1.msra.mxu0 0.0
    %1763 = vmatprep.mubr.f32.mxu0 0.0
    %1764 = vmatmul.mubr.f32.gmra.mrb[0].mxu0 %v1694
    %v1765 = vpop.f32.mrb[0].mxu0
    %v1766 = vadd.f32 0.0, %v1765
    %v1767 = vpop.f32.mrb[0].mxu0
    %1768 = vmatprep.mubr.f32.mxu0 0.0
    %1769 = vmatmul.mubr.f32.gmra.mrb[0].mxu0 %v1697
    %v1770 = vpop.f32.mrb[0].mxu0
    %v1771 = vadd.f32 0.0, %v1770
    %v1772 = vpop.f32.mrb[0].mxu0
    %1773 = vdwg.mxu0
    %1774 = vrot.lane.b32.xlu0 %v1257, 112
    %v1775 = vpop.permute.xlu0 %1774
    %1776 = vrot.lane.b32.xlu0 %v1262, 112
    %v1777 = vpop.permute.xlu0 %1776
    %1778 = vrot.lane.b32.xlu0 %v1355, 112
    %v1779 = vpop.permute.xlu0 %1778
    %1780 = vrot.lane.b32.xlu0 %v1356, 112
    %v1781 = vpop.permute.xlu0 %1780
    %v1782 = vsel %vm192, %v1775, 0
    %v1784 = vsel %vm192, %v1777, 0
    %v1786 = vsel %vm192, %v1779, 0
    %v1788 = vsel %vm192, %v1781, 0
    %1790 = vmatprep.subr.mxu0 0.0
    %1791 = vmatpush1.xpose.msra.mxu0 %v1786
    %1792 = vmatprep.subr.mxu0 0.0
    %1793 = vmatpush1.xpose.msra.mxu0 %v1788
    %1794 = vmatprep.subr.mxu0 0.0
    %1795 = vmatpush1.xpose.msra.mxu0 0.0
    %1796 = vmatprep.subr.mxu0 0.0
    %1797 = vmatpush1.xpose.msra.mxu0 0.0
    %1798 = vmatprep.subr.mxu0 0.0
    %1799 = vmatpush1.xpose.msra.mxu0 0.0
    %1800 = vmatprep.subr.mxu0 0.0
    %1801 = vmatpush1.xpose.msra.mxu0 0.0
    %1802 = vmatprep.subr.mxu0 0.0
    %1803 = vmatpush1.xpose.msra.mxu0 0.0
    %1804 = vmatprep.subr.mxu0 0.0
    %1805 = vmatpush1.xpose.msra.mxu0 0.0
    %1806 = vmatprep.subr.mxu0 0.0
    %1807 = vmatpush1.xpose.msra.mxu0 0.0
    %1808 = vmatprep.subr.mxu0 0.0
    %1809 = vmatpush1.xpose.msra.mxu0 0.0
    %1810 = vmatprep.subr.mxu0 0.0
    %1811 = vmatpush1.xpose.msra.mxu0 0.0
    %1812 = vmatprep.subr.mxu0 0.0
    %1813 = vmatpush1.xpose.msra.mxu0 0.0
    %1814 = vmatprep.subr.mxu0 0.0
    %1815 = vmatpush1.xpose.msra.mxu0 0.0
    %1816 = vmatprep.subr.mxu0 0.0
    %1817 = vmatpush1.xpose.msra.mxu0 0.0
    %1818 = vmatprep.subr.mxu0 0.0
    %1819 = vmatpush1.xpose.msra.mxu0 0.0
    %1820 = vmatprep.subr.mxu0 0.0
    %1821 = vmatpush1.xpose.msra.mxu0 0.0
    %1822 = vmatprep.subr.mxu0 0.0
    %1823 = vmatpush1.xpose.msra.mxu0 0.0
    %1824 = vmatprep.subr.mxu0 0.0
    %1825 = vmatpush1.xpose.msra.mxu0 0.0
    %1826 = vmatprep.subr.mxu0 0.0
    %1827 = vmatpush1.xpose.msra.mxu0 0.0
    %1828 = vmatprep.subr.mxu0 0.0
    %1829 = vmatpush1.xpose.msra.mxu0 0.0
    %1830 = vmatprep.subr.mxu0 0.0
    %1831 = vmatpush1.xpose.msra.mxu0 0.0
    %1832 = vmatprep.subr.mxu0 0.0
    %1833 = vmatpush1.xpose.msra.mxu0 0.0
    %1834 = vmatprep.subr.mxu0 0.0
    %1835 = vmatpush1.xpose.msra.mxu0 0.0
    %1836 = vmatprep.subr.mxu0 0.0
    %1837 = vmatpush1.xpose.msra.mxu0 0.0
    %1838 = vmatprep.subr.mxu0 0.0
    %1839 = vmatpush1.xpose.msra.mxu0 0.0
    %1840 = vmatprep.subr.mxu0 0.0
    %1841 = vmatpush1.xpose.msra.mxu0 0.0
    %1842 = vmatprep.subr.mxu0 0.0
    %1843 = vmatpush1.xpose.msra.mxu0 0.0
    %1844 = vmatprep.subr.mxu0 0.0
    %1845 = vmatpush1.xpose.msra.mxu0 0.0
    %1846 = vmatprep.subr.mxu0 0.0
    %1847 = vmatpush1.xpose.msra.mxu0 0.0
    %1848 = vmatprep.subr.mxu0 0.0
    %1849 = vmatpush1.xpose.msra.mxu0 0.0
    %1850 = vmatprep.subr.mxu0 0.0
    %1851 = vmatpush1.xpose.msra.mxu0 0.0
    %1852 = vmatprep.subr.mxu0 0.0
    %1853 = vmatpush1.xpose.msra.mxu0 0.0
    %1854 = vmatprep.mubr.f32.mxu0 0.0
    %1855 = vmatmul.mubr.f32.gmra.mrb[0].mxu0 %v1782
    %v1856 = vpop.f32.mrb[0].mxu0
    %v1857 = vadd.f32 0.0, %v1856
    %v1858 = vpop.f32.mrb[0].mxu0
    %1859 = vmatprep.mubr.f32.mxu0 0.0
    %1860 = vmatmul.mubr.f32.gmra.mrb[0].mxu0 %v1784
    %v1861 = vpop.f32.mrb[0].mxu0
    %v1862 = vadd.f32 0.0, %v1861
    %v1863 = vpop.f32.mrb[0].mxu0
    %1864 = vdwg.mxu0
    %v1865 = vmul.f32 %v1857, 0.35355338
    %v1866 = vmul.f32 %v1862, 0.35355338
    %v1867 = vadd.f32 %v1865, %v24
    %v1868 = vadd.f32 %v1866, %v25
    %v1869 = vsel %vm282, %v1867, -inf
    %1870 = vmax.xlane.f32.xlu0 %v1869
    %v1871 = vpop.xlane.xlu0 %1870
    %v1872 = vsel %vm282, %v1868, -inf
    %1873 = vmax.xlane.f32.xlu0 %v1872
    %v1874 = vpop.xlane.xlu0 %1873
    %v1875 = vsub.f32 %v1867, %v1871
    %v1876 = vsub.f32 %v1868, %v1874
    %v1877 = vmul.f32 %v1875, 1.442695
    %v1878 = vpow.pop %v1877
    %v1879 = vmul.f32 %v1876, 1.442695
    %v1880 = vpow.pop %v1879
    %v1881 = vsel %vm282, %v1878, 0.0
    %1882 = vadd.xlane.f32.xlu0 %v1881
    %v1883 = vpop.xlane.xlu0 %1882
    %v1884 = vsel %vm282, %v1880, 0.0
    %1885 = vadd.xlane.f32.xlu0 %v1884
    %v1886 = vpop.xlane.xlu0 %1885
    %v1887 = vrcp.pop %v1883
    %v1888 = vrcp.pop %v1886
    %v1889 = vmul.f32 %v1878, %v1887
    %v1890 = vmul.f32 %v1880, %v1888
    %1891 = vrot.lane.b32.xlu0 %v1366, 80
    %v1892 = vpop.permute.xlu0 %1891
    %1893 = vrot.lane.b32.xlu0 %v1367, 80
    %v1894 = vpop.permute.xlu0 %1893
    %v1898 = vsel %vm282, %v1889, 0
    %v1901 = vsel %vm282, %v1890, 0
    %1903 = vmatprep.subr.mxu0 0.0
    %1904 = vmatpush1.msra.mxu0 %v1892
    %1905 = vmatprep.subr.mxu0 0.0
    %1906 = vmatpush1.msra.mxu0 %v1894
    %1907 = vmatprep.subr.mxu0 0.0
    %1908 = vmatpush1.msra.mxu0 0.0
    %1909 = vmatprep.subr.mxu0 0.0
    %1910 = vmatpush1.msra.mxu0 0.0
    %1911 = vmatprep.subr.mxu0 0.0
    %1912 = vmatpush1.msra.mxu0 0.0
    %1913 = vmatprep.subr.mxu0 0.0
    %1914 = vmatpush1.msra.mxu0 0.0
    %1915 = vmatprep.subr.mxu0 0.0
    %1916 = vmatpush1.msra.mxu0 0.0
    %1917 = vmatprep.subr.mxu0 0.0
    %1918 = vmatpush1.msra.mxu0 0.0
    %1919 = vmatprep.subr.mxu0 0.0
    %1920 = vmatpush1.msra.mxu0 0.0
    %1921 = vmatprep.subr.mxu0 0.0
    %1922 = vmatpush1.msra.mxu0 0.0
    %1923 = vmatprep.subr.mxu0 0.0
    %1924 = vmatpush1.msra.mxu0 0.0
    %1925 = vmatprep.subr.mxu0 0.0
    %1926 = vmatpush1.msra.mxu0 0.0
    %1927 = vmatprep.subr.mxu0 0.0
    %1928 = vmatpush1.msra.mxu0 0.0
    %1929 = vmatprep.subr.mxu0 0.0
    %1930 = vmatpush1.msra.mxu0 0.0
    %1931 = vmatprep.subr.mxu0 0.0
    %1932 = vmatpush1.msra.mxu0 0.0
    %1933 = vmatprep.subr.mxu0 0.0
    %1934 = vmatpush1.msra.mxu0 0.0
    %1935 = vmatprep.subr.mxu0 0.0
    %1936 = vmatpush1.msra.mxu0 0.0
    %1937 = vmatprep.subr.mxu0 0.0
    %1938 = vmatpush1.msra.mxu0 0.0
    %1939 = vmatprep.subr.mxu0 0.0
    %1940 = vmatpush1.msra.mxu0 0.0
    %1941 = vmatprep.subr.mxu0 0.0
    %1942 = vmatpush1.msra.mxu0 0.0
    %1943 = vmatprep.subr.mxu0 0.0
    %1944 = vmatpush1.msra.mxu0 0.0
    %1945 = vmatprep.subr.mxu0 0.0
    %1946 = vmatpush1.msra.mxu0 0.0
    %1947 = vmatprep.subr.mxu0 0.0
    %1948 = vmatpush1.msra.mxu0 0.0
    %1949 = vmatprep.subr.mxu0 0.0
    %1950 = vmatpush1.msra.mxu0 0.0
    %1951 = vmatprep.subr.mxu0 0.0
    %1952 = vmatpush1.msra.mxu0 0.0
    %1953 = vmatprep.subr.mxu0 0.0
    %1954 = vmatpush1.msra.mxu0 0.0
    %1955 = vmatprep.subr.mxu0 0.0
    %1956 = vmatpush1.msra.mxu0 0.0
    %1957 = vmatprep.subr.mxu0 0.0
    %1958 = vmatpush1.msra.mxu0 0.0
    %1959 = vmatprep.subr.mxu0 0.0
    %1960 = vmatpush1.msra.mxu0 0.0
    %1961 = vmatprep.subr.mxu0 0.0
    %1962 = vmatpush1.msra.mxu0 0.0
    %1963 = vmatprep.subr.mxu0 0.0
    %1964 = vmatpush1.msra.mxu0 0.0
    %1965 = vmatprep.subr.mxu0 0.0
    %1966 = vmatpush1.msra.mxu0 0.0
    %1967 = vmatprep.mubr.f32.mxu0 0.0
    %1968 = vmatmul.mubr.f32.gmra.mrb[0].mxu0 %v1898
    %v1969 = vpop.f32.mrb[0].mxu0
    %v1970 = vadd.f32 0.0, %v1969
    %v1971 = vpop.f32.mrb[0].mxu0
    %1972 = vmatprep.mubr.f32.mxu0 0.0
    %1973 = vmatmul.mubr.f32.gmra.mrb[0].mxu0 %v1901
    %v1974 = vpop.f32.mrb[0].mxu0
    %v1975 = vadd.f32 0.0, %v1974
    %v1976 = vpop.f32.mrb[0].mxu0
    %1977 = vdwg.mxu0
    %1978 = vrot.lane.b32.xlu0 %v1257, 104
    %v1979 = vpop.permute.xlu0 %1978
    %1980 = vrot.lane.b32.xlu0 %v1262, 104
    %v1981 = vpop.permute.xlu0 %1980
    %1982 = vrot.lane.b32.xlu0 %v1355, 104
    %v1983 = vpop.permute.xlu0 %1982
    %1984 = vrot.lane.b32.xlu0 %v1356, 104
    %v1985 = vpop.permute.xlu0 %1984
    %v1986 = vsel %vm192, %v1979, 0
    %v1988 = vsel %vm192, %v1981, 0
    %v1990 = vsel %vm192, %v1983, 0
    %v1992 = vsel %vm192, %v1985, 0
    %1994 = vmatprep.subr.mxu0 0.0
    %1995 = vmatpush1.xpose.msra.mxu0 %v1990
    %1996 = vmatprep.subr.mxu0 0.0
    %1997 = vmatpush1.xpose.msra.mxu0 %v1992
    %1998 = vmatprep.subr.mxu0 0.0
    %1999 = vmatpush1.xpose.msra.mxu0 0.0
    %2000 = vmatprep.subr.mxu0 0.0
    %2001 = vmatpush1.xpose.msra.mxu0 0.0
    %2002 = vmatprep.subr.mxu0 0.0
    %2003 = vmatpush1.xpose.msra.mxu0 0.0
    %2004 = vmatprep.subr.mxu0 0.0
    %2005 = vmatpush1.xpose.msra.mxu0 0.0
    %2006 = vmatprep.subr.mxu0 0.0
    %2007 = vmatpush1.xpose.msra.mxu0 0.0
    %2008 = vmatprep.subr.mxu0 0.0
    %2009 = vmatpush1.xpose.msra.mxu0 0.0
    %2010 = vmatprep.subr.mxu0 0.0
    %2011 = vmatpush1.xpose.msra.mxu0 0.0
    %2012 = vmatprep.subr.mxu0 0.0
    %2013 = vmatpush1.xpose.msra.mxu0 0.0
    %2014 = vmatprep.subr.mxu0 0.0
    %2015 = vmatpush1.xpose.msra.mxu0 0.0
    %2016 = vmatprep.subr.mxu0 0.0
    %2017 = vmatpush1.xpose.msra.mxu0 0.0
    %2018 = vmatprep.subr.mxu0 0.0
    %2019 = vmatpush1.xpose.msra.mxu0 0.0
    %2020 = vmatprep.subr.mxu0 0.0
    %2021 = vmatpush1.xpose.msra.mxu0 0.0
    %2022 = vmatprep.subr.mxu0 0.0
    %2023 = vmatpush1.xpose.msra.mxu0 0.0
    %2024 = vmatprep.subr.mxu0 0.0
    %2025 = vmatpush1.xpose.msra.mxu0 0.0
    %2026 = vmatprep.subr.mxu0 0.0
    %2027 = vmatpush1.xpose.msra.mxu0 0.0
    %2028 = vmatprep.subr.mxu0 0.0
    %2029 = vmatpush1.xpose.msra.mxu0 0.0
    %2030 = vmatprep.subr.mxu0 0.0
    %2031 = vmatpush1.xpose.msra.mxu0 0.0
    %2032 = vmatprep.subr.mxu0 0.0
    %2033 = vmatpush1.xpose.msra.mxu0 0.0
    %2034 = vmatprep.subr.mxu0 0.0
    %2035 = vmatpush1.xpose.msra.mxu0 0.0
    %2036 = vmatprep.subr.mxu0 0.0
    %2037 = vmatpush1.xpose.msra.mxu0 0.0
    %2038 = vmatprep.subr.mxu0 0.0
    %2039 = vmatpush1.xpose.msra.mxu0 0.0
    %2040 = vmatprep.subr.mxu0 0.0
    %2041 = vmatpush1.xpose.msra.mxu0 0.0
    %2042 = vmatprep.subr.mxu0 0.0
    %2043 = vmatpush1.xpose.msra.mxu0 0.0
    %2044 = vmatprep.subr.mxu0 0.0
    %2045 = vmatpush1.xpose.msra.mxu0 0.0
    %2046 = vmatprep.subr.mxu0 0.0
    %2047 = vmatpush1.xpose.msra.mxu0 0.0
    %2048 = vmatprep.subr.mxu0 0.0
    %2049 = vmatpush1.xpose.msra.mxu0 0.0
    %2050 = vmatprep.subr.mxu0 0.0
    %2051 = vmatpush1.xpose.msra.mxu0 0.0
    %2052 = vmatprep.subr.mxu0 0.0
    %2053 = vmatpush1.xpose.msra.mxu0 0.0
    %2054 = vmatprep.subr.mxu0 0.0
    %2055 = vmatpush1.xpose.msra.mxu0 0.0
    %2056 = vmatprep.subr.mxu0 0.0
    %2057 = vmatpush1.xpose.msra.mxu0 0.0
    %2058 = vmatprep.mubr.f32.mxu0 0.0
    %2059 = vmatmul.mubr.f32.gmra.mrb[0].mxu0 %v1986
    %v2060 = vpop.f32.mrb[0].mxu0
    %v2061 = vadd.f32 0.0, %v2060
    %v2062 = vpop.f32.mrb[0].mxu0
    %2063 = vmatprep.mubr.f32.mxu0 0.0
    %2064 = vmatmul.mubr.f32.gmra.mrb[0].mxu0 %v1988
    %v2065 = vpop.f32.mrb[0].mxu0
    %v2066 = vadd.f32 0.0, %v2065
    %v2067 = vpop.f32.mrb[0].mxu0
    %2068 = vdwg.mxu0
    %v2069 = vmul.f32 %v2061, 0.35355338
    %v2070 = vmul.f32 %v2066, 0.35355338
    %v2071 = vadd.f32 %v2069, %v24
    %v2072 = vadd.f32 %v2070, %v25
    %v2073 = vsel %vm282, %v2071, -inf
    %2074 = vmax.xlane.f32.xlu0 %v2073
    %v2075 = vpop.xlane.xlu0 %2074
    %v2076 = vsel %vm282, %v2072, -inf
    %2077 = vmax.xlane.f32.xlu0 %v2076
    %v2078 = vpop.xlane.xlu0 %2077
    %v2079 = vsub.f32 %v2071, %v2075
    %v2080 = vsub.f32 %v2072, %v2078
    %v2081 = vmul.f32 %v2079, 1.442695
    %v2082 = vpow.pop %v2081
    %v2083 = vmul.f32 %v2080, 1.442695
    %v2084 = vpow.pop %v2083
    %v2085 = vsel %vm282, %v2082, 0.0
    %2086 = vadd.xlane.f32.xlu0 %v2085
    %v2087 = vpop.xlane.xlu0 %2086
    %v2088 = vsel %vm282, %v2084, 0.0
    %2089 = vadd.xlane.f32.xlu0 %v2088
    %v2090 = vpop.xlane.xlu0 %2089
    %v2091 = vrcp.pop %v2087
    %v2092 = vrcp.pop %v2090
    %v2093 = vmul.f32 %v2082, %v2091
    %v2094 = vmul.f32 %v2084, %v2092
    %2095 = vrot.lane.b32.xlu0 %v1366, 72
    %v2096 = vpop.permute.xlu0 %2095
    %2097 = vrot.lane.b32.xlu0 %v1367, 72
    %v2098 = vpop.permute.xlu0 %2097
    %v2102 = vsel %vm282, %v2093, 0
    %v2105 = vsel %vm282, %v2094, 0
    %2107 = vmatprep.subr.mxu0 0.0
    %2108 = vmatpush1.msra.mxu0 %v2096
    %2109 = vmatprep.subr.mxu0 0.0
    %2110 = vmatpush1.msra.mxu0 %v2098
    %2111 = vmatprep.subr.mxu0 0.0
    %2112 = vmatpush1.msra.mxu0 0.0
    %2113 = vmatprep.subr.mxu0 0.0
    %2114 = vmatpush1.msra.mxu0 0.0
    %2115 = vmatprep.subr.mxu0 0.0
    %2116 = vmatpush1.msra.mxu0 0.0
    %2117 = vmatprep.subr.mxu0 0.0
    %2118 = vmatpush1.msra.mxu0 0.0
    %2119 = vmatprep.subr.mxu0 0.0
    %2120 = vmatpush1.msra.mxu0 0.0
    %2121 = vmatprep.subr.mxu0 0.0
    %2122 = vmatpush1.msra.mxu0 0.0
    %2123 = vmatprep.subr.mxu0 0.0
    %2124 = vmatpush1.msra.mxu0 0.0
    %2125 = vmatprep.subr.mxu0 0.0
    %2126 = vmatpush1.msra.mxu0 0.0
    %2127 = vmatprep.subr.mxu0 0.0
    %2128 = vmatpush1.msra.mxu0 0.0
    %2129 = vmatprep.subr.mxu0 0.0
    %2130 = vmatpush1.msra.mxu0 0.0
    %2131 = vmatprep.subr.mxu0 0.0
    %2132 = vmatpush1.msra.mxu0 0.0
    %2133 = vmatprep.subr.mxu0 0.0
    %2134 = vmatpush1.msra.mxu0 0.0
    %2135 = vmatprep.subr.mxu0 0.0
    %2136 = vmatpush1.msra.mxu0 0.0
    %2137 = vmatprep.subr.mxu0 0.0
    %2138 = vmatpush1.msra.mxu0 0.0
    %2139 = vmatprep.subr.mxu0 0.0
    %2140 = vmatpush1.msra.mxu0 0.0
    %2141 = vmatprep.subr.mxu0 0.0
    %2142 = vmatpush1.msra.mxu0 0.0
    %2143 = vmatprep.subr.mxu0 0.0
    %2144 = vmatpush1.msra.mxu0 0.0
    %2145 = vmatprep.subr.mxu0 0.0
    %2146 = vmatpush1.msra.mxu0 0.0
    %2147 = vmatprep.subr.mxu0 0.0
    %2148 = vmatpush1.msra.mxu0 0.0
    %2149 = vmatprep.subr.mxu0 0.0
    %2150 = vmatpush1.msra.mxu0 0.0
    %2151 = vmatprep.subr.mxu0 0.0
    %2152 = vmatpush1.msra.mxu0 0.0
    %2153 = vmatprep.subr.mxu0 0.0
    %2154 = vmatpush1.msra.mxu0 0.0
    %2155 = vmatprep.subr.mxu0 0.0
    %2156 = vmatpush1.msra.mxu0 0.0
    %2157 = vmatprep.subr.mxu0 0.0
    %2158 = vmatpush1.msra.mxu0 0.0
    %2159 = vmatprep.subr.mxu0 0.0
    %2160 = vmatpush1.msra.mxu0 0.0
    %2161 = vmatprep.subr.mxu0 0.0
    %2162 = vmatpush1.msra.mxu0 0.0
    %2163 = vmatprep.subr.mxu0 0.0
    %2164 = vmatpush1.msra.mxu0 0.0
    %2165 = vmatprep.subr.mxu0 0.0
    %2166 = vmatpush1.msra.mxu0 0.0
    %2167 = vmatprep.subr.mxu0 0.0
    %2168 = vmatpush1.msra.mxu0 0.0
    %2169 = vmatprep.subr.mxu0 0.0
    %2170 = vmatpush1.msra.mxu0 0.0
    %2171 = vmatprep.mubr.f32.mxu0 0.0
    %2172 = vmatmul.mubr.f32.gmra.mrb[0].mxu0 %v2102
    %v2173 = vpop.f32.mrb[0].mxu0
    %v2174 = vadd.f32 0.0, %v2173
    %v2175 = vpop.f32.mrb[0].mxu0
    %2176 = vmatprep.mubr.f32.mxu0 0.0
    %2177 = vmatmul.mubr.f32.gmra.mrb[0].mxu0 %v2105
    %v2178 = vpop.f32.mrb[0].mxu0
    %v2179 = vadd.f32 0.0, %v2178
    %v2180 = vpop.f32.mrb[0].mxu0
    %2181 = vdwg.mxu0
    %2184 = vrot.lane.b32.xlu0 %v1766, 8
    %v2185 = vpop.permute.xlu0 %2184
    %2186 = vrot.lane.b32.xlu0 %v1771, 8
    %v2187 = vpop.permute.xlu0 %2186
    %2192 = vrot.lane.b32.xlu0 %v1970, 16
    %v2193 = vpop.permute.xlu0 %2192
    %2194 = vrot.lane.b32.xlu0 %v1975, 16
    %v2195 = vpop.permute.xlu0 %2194
    %2200 = vrot.lane.b32.xlu0 %v2174, 24
    %v2201 = vpop.permute.xlu0 %2200
    %2202 = vrot.lane.b32.xlu0 %v2179, 24
    %v2203 = vpop.permute.xlu0 %2202
    %v2206 = vsel %vm192, %v1562, %v2185
    %v2207 = vsel %vm192, %v1567, %v2187
    %v2208 = vsel %vm282, %v2206, %v2193
    %v2209 = vsel %vm282, %v2207, %v2195
    %v2210 = vsel %vm1034, %v2208, %v2201
    %v2211 = vsel %vm1034, %v2209, %v2203
    %v2212 = vld [vmem:[%s2 + $0xe0] sm:$0xff]
    %v2213 = vld [vmem:[%s2 + $0xe8] sm:$0xff]
    %v2214 = vld [vmem:[%s2 + $0xf0] sm:$0xff]
    %v2215 = vld [vmem:[%s2 + $0xf8] sm:$0xff]
    %v2217 = vsel %vm28, %v2210, 0
    %v2220 = vsel %vm28, %v2211, 0
    %2222 = vmatprep.subr.mxu0 0.0
    %2223 = vmatpush1.msra.mxu0 %v2212
    %2224 = vmatprep.subr.mxu0 0.0
    %2225 = vmatpush1.msra.mxu0 %v2213
    %2226 = vmatprep.subr.mxu0 0.0
    %2227 = vmatpush1.msra.mxu0 %v2214
    %2228 = vmatprep.subr.mxu0 0.0
    %2229 = vmatpush1.msra.mxu0 %v2215
    %2230 = vmatprep.subr.mxu0 0.0
    %2231 = vmatpush1.msra.mxu0 0.0
    %2232 = vmatprep.subr.mxu0 0.0
    %2233 = vmatpush1.msra.mxu0 0.0
    %2234 = vmatprep.subr.mxu0 0.0
    %2235 = vmatpush1.msra.mxu0 0.0
    %2236 = vmatprep.subr.mxu0 0.0
    %2237 = vmatpush1.msra.mxu0 0.0
    %2238 = vmatprep.subr.mxu0 0.0
    %2239 = vmatpush1.msra.mxu0 0.0
    %2240 = vmatprep.subr.mxu0 0.0
    %2241 = vmatpush1.msra.mxu0 0.0
    %2242 = vmatprep.subr.mxu0 0.0
    %2243 = vmatpush1.msra.mxu0 0.0
    %2244 = vmatprep.subr.mxu0 0.0
    %2245 = vmatpush1.msra.mxu0 0.0
    %2246 = vmatprep.subr.mxu0 0.0
    %2247 = vmatpush1.msra.mxu0 0.0
    %2248 = vmatprep.subr.mxu0 0.0
    %2249 = vmatpush1.msra.mxu0 0.0
    %2250 = vmatprep.subr.mxu0 0.0
    %2251 = vmatpush1.msra.mxu0 0.0
    %2252 = vmatprep.subr.mxu0 0.0
    %2253 = vmatpush1.msra.mxu0 0.0
    %2254 = vmatprep.subr.mxu0 0.0
    %2255 = vmatpush1.msra.mxu0 0.0
    %2256 = vmatprep.subr.mxu0 0.0
    %2257 = vmatpush1.msra.mxu0 0.0
    %2258 = vmatprep.subr.mxu0 0.0
    %2259 = vmatpush1.msra.mxu0 0.0
    %2260 = vmatprep.subr.mxu0 0.0
    %2261 = vmatpush1.msra.mxu0 0.0
    %2262 = vmatprep.subr.mxu0 0.0
    %2263 = vmatpush1.msra.mxu0 0.0
    %2264 = vmatprep.subr.mxu0 0.0
    %2265 = vmatpush1.msra.mxu0 0.0
    %2266 = vmatprep.subr.mxu0 0.0
    %2267 = vmatpush1.msra.mxu0 0.0
    %2268 = vmatprep.subr.mxu0 0.0
    %2269 = vmatpush1.msra.mxu0 0.0
    %2270 = vmatprep.subr.mxu0 0.0
    %2271 = vmatpush1.msra.mxu0 0.0
    %2272 = vmatprep.subr.mxu0 0.0
    %2273 = vmatpush1.msra.mxu0 0.0
    %2274 = vmatprep.subr.mxu0 0.0
    %2275 = vmatpush1.msra.mxu0 0.0
    %2276 = vmatprep.subr.mxu0 0.0
    %2277 = vmatpush1.msra.mxu0 0.0
    %2278 = vmatprep.subr.mxu0 0.0
    %2279 = vmatpush1.msra.mxu0 0.0
    %2280 = vmatprep.subr.mxu0 0.0
    %2281 = vmatpush1.msra.mxu0 0.0
    %2282 = vmatprep.subr.mxu0 0.0
    %2283 = vmatpush1.msra.mxu0 0.0
    %2284 = vmatprep.subr.mxu0 0.0
    %2285 = vmatpush1.msra.mxu0 0.0
    %2286 = vmatprep.mubr.f32.mxu0 0.0
    %2287 = vmatmul.mubr.f32.gmra.mrb[0].mxu0 %v2217
    %v2288 = vpop.f32.mrb[0].mxu0
    %v2289 = vadd.f32 0.0, %v2288
    %v2290 = vpop.f32.mrb[0].mxu0
    %2291 = vmatprep.mubr.f32.mxu0 0.0
    %2292 = vmatmul.mubr.f32.gmra.mrb[0].mxu0 %v2220
    %v2293 = vpop.f32.mrb[0].mxu0
    %v2294 = vadd.f32 0.0, %v2293
    %v2295 = vpop.f32.mrb[0].mxu0
    %2296 = vdwg.mxu0
    %v2297 = vadd.f32 %v1129, %v2289
    %v2298 = vadd.f32 %v1130, %v2294
    %v2299 = vld [vmem:[%s3 + $0xd] sm:$0x1]
    %v2300 = vlaneseq
    %v2301 = vshrl.u32 %v2300, 7
    %v2302 = vsub.s32 0, %v2301
    %v2303 = vrot.slane %v2299, %v2302
    %v2304 = vadd.f32 %v2297, %v2303
    %v2305 = vadd.f32 %v2298, %v2303
    %v2306 = vld [vmem:[%s3 + $0x4] sm:$0x1]
    %v2307 = vld [vmem:[%s3 + $0x5] sm:$0x1]
    %v2308 = vsel %vm28, %v2304, 0.0
    %2309 = vadd.xlane.f32.xlu0 %v2308
    %v2310 = vpop.xlane.xlu0 %2309
    %v2311 = vsel %vm28, %v2305, 0.0
    %2312 = vadd.xlane.f32.xlu0 %v2311
    %v2313 = vpop.xlane.xlu0 %2312
    %v2314 = vmul.f32 %v2310, %v35
    %v2315 = vmul.f32 %v2313, %v35
    %v2316 = vmul.f32 %v2304, %v2304
    %v2317 = vmul.f32 %v2305, %v2305
    %v2318 = vsel %vm28, %v2316, 0.0
    %2319 = vadd.xlane.f32.xlu0 %v2318
    %v2320 = vpop.xlane.xlu0 %2319
    %v2321 = vsel %vm28, %v2317, 0.0
    %2322 = vadd.xlane.f32.xlu0 %v2321
    %v2323 = vpop.xlane.xlu0 %2322
    %v2324 = vmul.f32 %v2320, %v35
    %v2325 = vmul.f32 %v2323, %v35
    %v2326 = vmul.f32 %v2314, %v2314
    %v2327 = vmul.f32 %v2315, %v2315
    %v2328 = vsub.f32 %v2324, %v2326
    %v2329 = vsub.f32 %v2325, %v2327
    %v2330 = vsub.f32 %v2304, %v2314
    %v2331 = vsub.f32 %v2305, %v2315
    %v2332 = vadd.f32 %v2328, 1e-06
    %v2333 = vadd.f32 %v2329, 1e-06
    %v2334 = vrsqrt.pop %v2332
    %v2335 = vrsqrt.pop %v2333
    %v2336 = vmul.f32 %v2330, %v2334
    %v2337 = vmul.f32 %v2331, %v2335
    %v2338 = vlaneseq
    %v2339 = vshrl.u32 %v2338, 7
    %v2340 = vsub.s32 0, %v2339
    %v2341 = vrot.slane %v2306, %v2340
    %v2342 = vmul.f32 %v2336, %v2341
    %v2343 = vmul.f32 %v2337, %v2341
    %v2344 = vlaneseq
    %v2345 = vshrl.u32 %v2344, 7
    %v2346 = vsub.s32 0, %v2345
    %v2347 = vrot.slane %v2307, %v2346
    %v2348 = vadd.f32 %v2342, %v2347
    %v2349 = vadd.f32 %v2343, %v2347
    %v2350 = vld [vmem:[%s2 + $0x40] sm:$0xff]
    %v2351 = vld [vmem:[%s2 + $0x48] sm:$0xff]
    %v2352 = vld [vmem:[%s2 + $0x50] sm:$0xff]
    %v2353 = vld [vmem:[%s2 + $0x58] sm:$0xff]
    %v2354 = vld [vmem:[%s3 + $0xe] sm:$0x1]
    %v2355 = vlaneseq
    %v2356 = vshrl.u32 %v2355, 7
    %v2357 = vsub.s32 0, %v2356
    %v2358 = vrot.slane %v2354, %v2357
    %v2360 = vsel %vm28, %v2348, 0
    %v2363 = vsel %vm28, %v2349, 0
    %2365 = vmatprep.subr.mxu0 0.0
    %2366 = vmatpush1.msra.mxu0 %v2350
    %2367 = vmatprep.subr.mxu0 0.0
    %2368 = vmatpush1.msra.mxu0 %v2351
    %2369 = vmatprep.subr.mxu0 0.0
    %2370 = vmatpush1.msra.mxu0 %v2352
    %2371 = vmatprep.subr.mxu0 0.0
    %2372 = vmatpush1.msra.mxu0 %v2353
    %2373 = vmatprep.subr.mxu0 0.0
    %2374 = vmatpush1.msra.mxu0 0.0
    %2375 = vmatprep.subr.mxu0 0.0
    %2376 = vmatpush1.msra.mxu0 0.0
    %2377 = vmatprep.subr.mxu0 0.0
    %2378 = vmatpush1.msra.mxu0 0.0
    %2379 = vmatprep.subr.mxu0 0.0
    %2380 = vmatpush1.msra.mxu0 0.0
    %2381 = vmatprep.subr.mxu0 0.0
    %2382 = vmatpush1.msra.mxu0 0.0
    %2383 = vmatprep.subr.mxu0 0.0
    %2384 = vmatpush1.msra.mxu0 0.0
    %2385 = vmatprep.subr.mxu0 0.0
    %2386 = vmatpush1.msra.mxu0 0.0
    %2387 = vmatprep.subr.mxu0 0.0
    %2388 = vmatpush1.msra.mxu0 0.0
    %2389 = vmatprep.subr.mxu0 0.0
    %2390 = vmatpush1.msra.mxu0 0.0
    %2391 = vmatprep.subr.mxu0 0.0
    %2392 = vmatpush1.msra.mxu0 0.0
    %2393 = vmatprep.subr.mxu0 0.0
    %2394 = vmatpush1.msra.mxu0 0.0
    %2395 = vmatprep.subr.mxu0 0.0
    %2396 = vmatpush1.msra.mxu0 0.0
    %2397 = vmatprep.subr.mxu0 0.0
    %2398 = vmatpush1.msra.mxu0 0.0
    %2399 = vmatprep.subr.mxu0 0.0
    %2400 = vmatpush1.msra.mxu0 0.0
    %2401 = vmatprep.subr.mxu0 0.0
    %2402 = vmatpush1.msra.mxu0 0.0
    %2403 = vmatprep.subr.mxu0 0.0
    %2404 = vmatpush1.msra.mxu0 0.0
    %2405 = vmatprep.subr.mxu0 0.0
    %2406 = vmatpush1.msra.mxu0 0.0
    %2407 = vmatprep.subr.mxu0 0.0
    %2408 = vmatpush1.msra.mxu0 0.0
    %2409 = vmatprep.subr.mxu0 0.0
    %2410 = vmatpush1.msra.mxu0 0.0
    %2411 = vmatprep.subr.mxu0 0.0
    %2412 = vmatpush1.msra.mxu0 0.0
    %2413 = vmatprep.subr.mxu0 0.0
    %2414 = vmatpush1.msra.mxu0 0.0
    %2415 = vmatprep.subr.mxu0 0.0
    %2416 = vmatpush1.msra.mxu0 0.0
    %2417 = vmatprep.subr.mxu0 0.0
    %2418 = vmatpush1.msra.mxu0 0.0
    %2419 = vmatprep.subr.mxu0 0.0
    %2420 = vmatpush1.msra.mxu0 0.0
    %2421 = vmatprep.subr.mxu0 0.0
    %2422 = vmatpush1.msra.mxu0 0.0
    %2423 = vmatprep.subr.mxu0 0.0
    %2424 = vmatpush1.msra.mxu0 0.0
    %2425 = vmatprep.subr.mxu0 0.0
    %2426 = vmatpush1.msra.mxu0 0.0
    %2427 = vmatprep.subr.mxu0 0.0
    %2428 = vmatpush1.msra.mxu0 0.0
    %2429 = vmatprep.mubr.f32.mxu0 0.0
    %2430 = vmatmul.mubr.f32.gmra.mrb[0].mxu0 %v2360
    %v2431 = vpop.f32.mrb[0].mxu0
    %v2432 = vadd.f32 %v2358, %v2431
    %v2433 = vpop.f32.mrb[0].mxu0
    %2434 = vmatprep.mubr.f32.mxu0 0.0
    %2435 = vmatmul.mubr.f32.gmra.mrb[0].mxu0 %v2363
    %v2436 = vpop.f32.mrb[0].mxu0
    %v2437 = vadd.f32 %v2358, %v2436
    %v2438 = vpop.f32.mrb[0].mxu0
    %2439 = vdwg.mxu0
    %v2440 = vmax.f32 %v2432, 0.0
    %v2441 = vmax.f32 %v2437, 0.0
    %v2442 = vld [vmem:[%s2 + $0x60] sm:$0xff]
    %v2443 = vld [vmem:[%s2 + $0x68] sm:$0xff]
    %v2444 = vld [vmem:[%s2 + $0x70] sm:$0xff]
    %v2445 = vld [vmem:[%s2 + $0x78] sm:$0xff]
    %v2446 = vld [vmem:[%s2 + $0x80] sm:$0xff]
    %v2447 = vld [vmem:[%s2 + $0x88] sm:$0xff]
    %v2448 = vld [vmem:[%s2 + $0x90] sm:$0xff]
    %v2449 = vld [vmem:[%s2 + $0x98] sm:$0xff]
    %vm2450 = vcmask 523264
    %v2452 = vsel %vm2450, %v2440, 0
    %v2455 = vsel %vm2450, %v2441, 0
    %2457 = vmatprep.subr.mxu0 0.0
    %2458 = vmatpush1.msra.mxu0 %v2442
    %2459 = vmatprep.subr.mxu0 0.0
    %2460 = vmatpush1.msra.mxu0 %v2443
    %2461 = vmatprep.subr.mxu0 0.0
    %2462 = vmatpush1.msra.mxu0 %v2444
    %2463 = vmatprep.subr.mxu0 0.0
    %2464 = vmatpush1.msra.mxu0 %v2445
    %2465 = vmatprep.subr.mxu0 0.0
    %2466 = vmatpush1.msra.mxu0 %v2446
    %2467 = vmatprep.subr.mxu0 0.0
    %2468 = vmatpush1.msra.mxu0 %v2447
    %2469 = vmatprep.subr.mxu0 0.0
    %2470 = vmatpush1.msra.mxu0 %v2448
    %2471 = vmatprep.subr.mxu0 0.0
    %2472 = vmatpush1.msra.mxu0 %v2449
    %2473 = vmatprep.subr.mxu0 0.0
    %2474 = vmatpush1.msra.mxu0 0.0
    %2475 = vmatprep.subr.mxu0 0.0
    %2476 = vmatpush1.msra.mxu0 0.0
    %2477 = vmatprep.subr.mxu0 0.0
    %2478 = vmatpush1.msra.mxu0 0.0
    %2479 = vmatprep.subr.mxu0 0.0
    %2480 = vmatpush1.msra.mxu0 0.0
    %2481 = vmatprep.subr.mxu0 0.0
    %2482 = vmatpush1.msra.mxu0 0.0
    %2483 = vmatprep.subr.mxu0 0.0
    %2484 = vmatpush1.msra.mxu0 0.0
    %2485 = vmatprep.subr.mxu0 0.0
    %2486 = vmatpush1.msra.mxu0 0.0
    %2487 = vmatprep.subr.mxu0 0.0
    %2488 = vmatpush1.msra.mxu0 0.0
    %2489 = vmatprep.subr.mxu0 0.0
    %2490 = vmatpush1.msra.mxu0 0.0
    %2491 = vmatprep.subr.mxu0 0.0
    %2492 = vmatpush1.msra.mxu0 0.0
    %2493 = vmatprep.subr.mxu0 0.0
    %2494 = vmatpush1.msra.mxu0 0.0
    %2495 = vmatprep.subr.mxu0 0.0
    %2496 = vmatpush1.msra.mxu0 0.0
    %2497 = vmatprep.subr.mxu0 0.0
    %2498 = vmatpush1.msra.mxu0 0.0
    %2499 = vmatprep.subr.mxu0 0.0
    %2500 = vmatpush1.msra.mxu0 0.0
    %2501 = vmatprep.subr.mxu0 0.0
    %2502 = vmatpush1.msra.mxu0 0.0
    %2503 = vmatprep.subr.mxu0 0.0
    %2504 = vmatpush1.msra.mxu0 0.0
    %2505 = vmatprep.subr.mxu0 0.0
    %2506 = vmatpush1.msra.mxu0 0.0
    %2507 = vmatprep.subr.mxu0 0.0
    %2508 = vmatpush1.msra.mxu0 0.0
    %2509 = vmatprep.subr.mxu0 0.0
    %2510 = vmatpush1.msra.mxu0 0.0
    %2511 = vmatprep.subr.mxu0 0.0
    %2512 = vmatpush1.msra.mxu0 0.0
    %2513 = vmatprep.subr.mxu0 0.0
    %2514 = vmatpush1.msra.mxu0 0.0
    %2515 = vmatprep.subr.mxu0 0.0
    %2516 = vmatpush1.msra.mxu0 0.0
    %2517 = vmatprep.subr.mxu0 0.0
    %2518 = vmatpush1.msra.mxu0 0.0
    %2519 = vmatprep.subr.mxu0 0.0
    %2520 = vmatpush1.msra.mxu0 0.0
    %2521 = vmatprep.mubr.f32.mxu0 0.0
    %2522 = vmatmul.mubr.f32.gmra.mrb[0].mxu0 %v2452
    %v2523 = vpop.f32.mrb[0].mxu0
    %v2524 = vadd.f32 0.0, %v2523
    %v2525 = vpop.f32.mrb[0].mxu0
    %2526 = vmatprep.mubr.f32.mxu0 0.0
    %2527 = vmatmul.mubr.f32.gmra.mrb[0].mxu0 %v2455
    %v2528 = vpop.f32.mrb[0].mxu0
    %v2529 = vadd.f32 0.0, %v2528
    %v2530 = vpop.f32.mrb[0].mxu0
    %2531 = vdwg.mxu0
    %v2532 = vadd.f32 %v2304, %v2524
    %v2533 = vadd.f32 %v2305, %v2529
    %v2534 = vld [vmem:[%s3 + $0xf] sm:$0x1]
    %v2535 = vlaneseq
    %v2536 = vshrl.u32 %v2535, 7
    %v2537 = vsub.s32 0, %v2536
    %v2538 = vrot.slane %v2534, %v2537
    %v2539 = vadd.f32 %v2532, %v2538
    %v2540 = vadd.f32 %v2533, %v2538
    %2541 = vst.msk [vmem:[#allocation2] sm:$0xff] %vm28, %v2539
    %2542 = vst.msk [vmem:[#allocation2 + $0x8] sm:$0xff] %vm28, %v2540
    // Predicated region
    $region18: #{decoder_layer.1} parent=1 // pred_check
      _
    $region19: #{decoder_layer.1} parent=1 // pred_check_branch
      %2544 = sbr.rel (0) target = $region21
    $region20: #{decoder_layer.1} parent=1 // pred_region
      %s2546 = ssub.s32 256, 256
      %2547 = vsyncadd [#allocation3], %s2546
      %s2548 = sshll.u32 [#allocation2], 4
      %s2549 = int_to_ptr.vmem [resolvable:$true] %s2548
      %2554 = dma.vmem_to_hbm [thread:$0]  %s2549, 256, %s4, [#allocation3], 128, 128, 8
    $region21: #{decoder_layer.1} parent=1 // pred_fallthru
      _
    // Predicated region
    $region22: #{decoder_layer.1} parent=1 // pred_check
      _
    $region23: #{decoder_layer.1} parent=1 // pred_check_branch
      %2556 = sbr.rel (0) target = $region25
    $region24: #{decoder_layer.1} parent=1 // pred_region
      %2557 = dma.done [#allocation3], 256
    $region25: #{decoder_layer.1} parent=1 // pred_fallthru
      _
    %2558 = vsyncpa [#allocation3], 1

</llo_original>
